<compile_context>
chip_gen: v7x
topology: tpu7x:2x2x1
jax: 0.10.0
libtpu: 0.0.40
codegen_flags: <defaults>
</compile_context>

<pallas_src>
import math

import jax
import jax.numpy as jnp
from jax import lax
from jax.experimental import pallas as pl
from jax.experimental.pallas import tpu as pltpu


# ----------------------------------------------------------------------------
# Fused multi-layer LSTM encoder kernel (whole problem resident in VMEM)
# ----------------------------------------------------------------------------
def _make_encoder_kernel(S, Bp, E, H, L):
    """Build the fused kernel for static shapes (S, Bp, E, H) and L layers."""

    def kernel(*refs):
        x_ref = refs[0]                       # (S, Bp, E)  embedded inputs
        w_refs = refs[1:1 + 3 * L]            # per layer: w_ih_t, w_hh_t, bias
        h_out_ref = refs[1 + 3 * L]           # (L, Bp, H)
        c_out_ref = refs[2 + 3 * L]           # (L, Bp, H)
        ys_ref = refs[3 + 3 * L]              # (S, Bp, H)   inter-layer activations
        gates_ref = refs[4 + 3 * L]           # (S, Bp, 4H)  staged input projection

        for l in range(L):                    # layers unrolled at trace time
            wih_ref = w_refs[3 * l + 0]       # (in_dim, 4H)
            whh_ref = w_refs[3 * l + 1]       # (H, 4H)
            b_ref = w_refs[3 * l + 2]         # (1, 4H)

            # ---- Phase 1: input projection for ALL timesteps, one MXU matmul.
            if l == 0:
                xin = x_ref[...].reshape(S * Bp, E)
            else:
                xin = ys_ref[...].reshape(S * Bp, H)
            gx = jnp.dot(xin, wih_ref[...], preferred_element_type=jnp.float32)
            gates_ref[...] = (gx + b_ref[...]).reshape(S, Bp, 4 * H)

            whh = whh_ref[...]                # (H, 4H), kept in vregs for the loop
            write_ys = (l != L - 1)           # last layer's per-step outputs unused

            # ---- Phase 2: sequential time recurrence fully inside the kernel.
            def step(t, carry, _whh=whh, _write=write_ys):
                h, c = carry
                gates = gates_ref[t] + jnp.dot(
                    h, _whh, preferred_element_type=jnp.float32)     # (Bp, 4H)
                # Nonlinearities on the full 128-lane vreg (EUP), then slice.
                sg = jax.nn.sigmoid(gates)
                tg = jnp.tanh(gates)
                i_g = sg[:, 0 * H:1 * H]
                f_g = sg[:, 1 * H:2 * H]
                g_g = tg[:, 2 * H:3 * H]
                o_g = sg[:, 3 * H:4 * H]
                c_new = f_g * c + i_g * g_g
                h_new = o_g * jnp.tanh(c_new)
                if _write:
                    ys_ref[t] = h_new          # feed the next layer (VMEM only)
                return h_new, c_new

            h0 = jnp.zeros((Bp, H), jnp.float32)
            c0 = jnp.zeros((Bp, H), jnp.float32)
            h_n, c_n = lax.fori_loop(0, S, step, (h0, c0), unroll=True)

            # Final states: one small write per layer (no per-step HBM stores).
            h_out_ref[l] = h_n
            c_out_ref[l] = c_n

    return kernel


def _round_up(x, m):
    return ((x + m - 1) // m) * m


def encoder_pallas(x_emb, layers):
    """x_emb: (S, B, E) f32; layers: list of {w_ih_t, w_hh_t, bias}.

    Returns (hidden (L,B,H), cell (L,B,H)).
    """
    S, B, E = x_emb.shape
    L = len(layers)
    H = layers[0]["w_hh_t"].shape[0]

    # Pad batch to the 8-sublane width; padded rows are sliced off afterwards.
    Bp = _round_up(B, 8)
    if Bp != B:
        x_emb = jnp.pad(x_emb, ((0, 0), (0, Bp - B), (0, 0)))

    inputs = [x_emb]
    in_specs = [pl.BlockSpec((S, Bp, E), lambda i: (0, 0, 0))]
    for layer in layers:
        wih_t, whh_t, bias = layer["w_ih_t"], layer["w_hh_t"], layer["bias"]
        in_dim = wih_t.shape[0]
        inputs += [wih_t, whh_t, bias]
        in_specs += [
            pl.BlockSpec((in_dim, 4 * H), lambda i: (0, 0)),
            pl.BlockSpec((H, 4 * H), lambda i: (0, 0)),
            pl.BlockSpec((1, 4 * H), lambda i: (0, 0)),
        ]

    out_shape = (
        jax.ShapeDtypeStruct((L, Bp, H), jnp.float32),
        jax.ShapeDtypeStruct((L, Bp, H), jnp.float32),
    )
    out_specs = [
        pl.BlockSpec((L, Bp, H), lambda i: (0, 0, 0)),
        pl.BlockSpec((L, Bp, H), lambda i: (0, 0, 0)),
    ]

    grid_spec = pltpu.PrefetchScalarGridSpec(
        num_scalar_prefetch=0,
        grid=(1,),                       # whole encoder in one kernel invocation
        in_specs=in_specs,
        out_specs=out_specs,
        scratch_shapes=[
            pltpu.VMEM((S, Bp, H), jnp.float32),       # inter-layer activations
            pltpu.VMEM((S, Bp, 4 * H), jnp.float32),   # staged input projection
        ],
    )

    hidden, cell = pl.pallas_call(
        _make_encoder_kernel(S, Bp, E, H, L),
        out_shape=out_shape,
        grid_spec=grid_spec,
        compiler_params=pltpu.CompilerParams(
            dimension_semantics=("arbitrary",)),   # recurrence -> sequential
    )(*inputs)

    return hidden[:, :B, :], cell[:, :B, :]


# ----------------------------------------------------------------------------
# Encoder (embedding + stacked LSTM) parameters & forward
# ----------------------------------------------------------------------------
def init_encoder_params(key, input_dim, emb_dim, hid_dim, n_layers):
    """Weights are stored pre-transposed and biases pre-folded for the kernel."""
    k = 1.0 / math.sqrt(hid_dim)
    key, ek = jax.random.split(key)
    params = {"embedding": jax.random.normal(ek, (input_dim, emb_dim), jnp.float32)}
    layers = []
    for l in range(n_layers):
        in_dim = emb_dim if l == 0 else hid_dim
        key, k1, k2, k3, k4 = jax.random.split(key, 5)
        w_ih = jax.random.uniform(k1, (4 * hid_dim, in_dim), jnp.float32, -k, k)
        w_hh = jax.random.uniform(k2, (4 * hid_dim, hid_dim), jnp.float32, -k, k)
        b_ih = jax.random.uniform(k3, (4 * hid_dim,), jnp.float32, -k, k)
        b_hh = jax.random.uniform(k4, (4 * hid_dim,), jnp.float32, -k, k)
        layers.append(dict(
            w_ih_t=jnp.asarray(w_ih.T),            # (in_dim, 4H)
            w_hh_t=jnp.asarray(w_hh.T),            # (H, 4H)
            bias=(b_ih + b_hh)[None, :],           # (1, 4H), folded
        ))
    params["layers"] = layers
    return params


@jax.jit
def encoder_forward(params, src):
    """src: (seq_len, batch) int32 -> (hidden, cell), each (n_layers, batch, hid)."""
    # Embedding lookup (gather) is plain-JAX glue; dropout is identity at inference.
    # TODO(synk): training-mode dropout (on embeddings / between LSTM layers) is not implemented.
    x = jnp.take(params["embedding"], src, axis=0)     # (S, B, E) f32
    return encoder_pallas(x, params["layers"])


# ----------------------------------------------------------------------------
# Pure-JAX reference (lax.scan) for correctness check
# ----------------------------------------------------------------------------
def encoder_forward_ref(params, src):
    x = jnp.take(params["embedding"], src, axis=0)
    hs, cs = [], []
    for layer in params["layers"]:
        w_ih_t, w_hh_t = layer["w_ih_t"], layer["w_hh_t"]
        b = layer["bias"][0]
        H = w_hh_t.shape[0]
        B = x.shape[1]

        def step(carry, x_t):
            h, c = carry
            gates = x_t @ w_ih_t + h @ w_hh_t + b
            i, f, g, o = jnp.split(gates, 4, axis=-1)
            c = jax.nn.sigmoid(f) * c + jax.nn.sigmoid(i) * jnp.tanh(g)
            h = jax.nn.sigmoid(o) * jnp.tanh(c)
            return (h, c), h

        init = (jnp.zeros((B, H), jnp.float32), jnp.zeros((B, H), jnp.float32))
        (h_n, c_n), y = lax.scan(step, init, x)
        hs.append(h_n)
        cs.append(c_n)
        x = y
    return jnp.stack(hs, 0), jnp.stack(cs, 0)


if __name__ == "__main__":
    # Small shapes consistent with the module's forward.
    INPUT_DIM, EMB_DIM, HID_DIM, N_LAYERS = 50, 32, 32, 2
    SEQ_LEN, BATCH = 8, 2

    key = jax.random.PRNGKey(0)
    pkey, skey = jax.random.split(key)
    params = init_encoder_params(pkey, INPUT_DIM, EMB_DIM, HID_DIM, N_LAYERS)
    src = jax.random.randint(skey, (SEQ_LEN, BATCH), 0, INPUT_DIM, dtype=jnp.int32)

    hidden, cell = encoder_forward(params, src)
    jax.block_until_ready((hidden, cell))

    hidden_ref, cell_ref = encoder_forward_ref(params, src)
    assert hidden.shape == (N_LAYERS, BATCH, HID_DIM)
    assert cell.shape == (N_LAYERS, BATCH, HID_DIM)
    assert jnp.allclose(hidden, hidden_ref, atol=1e-5, rtol=1e-5)
    assert jnp.allclose(cell, cell_ref, atol=1e-5, rtol=1e-5)

    print("KERNEL_OK")
</pallas_src>

<mosaic_0001>
module attributes {stable_mosaic.version = 11 : i64} {
  func.func @kernel(%arg0: i32, %arg1: memref<8x8x32xf32, #tpu.memory_space<vmem>>, %arg2: memref<32x128xf32, #tpu.memory_space<vmem>>, %arg3: memref<32x128xf32, #tpu.memory_space<vmem>>, %arg4: memref<1x128xf32, #tpu.memory_space<vmem>>, %arg5: memref<32x128xf32, #tpu.memory_space<vmem>>, %arg6: memref<32x128xf32, #tpu.memory_space<vmem>>, %arg7: memref<1x128xf32, #tpu.memory_space<vmem>>, %arg8: memref<2x8x32xf32, #tpu.memory_space<vmem>>, %arg9: memref<2x8x32xf32, #tpu.memory_space<vmem>>, %arg10: memref<8x8x32xf32, #tpu.memory_space<vmem>>, %arg11: memref<8x8x128xf32, #tpu.memory_space<vmem>>) attributes {dimension_semantics = [#tpu.dimension_semantics<arbitrary>], iteration_bounds = array<i64: 1>, scalar_prefetch = 0 : i64, scratch_operands = 2 : i64, tpu.core_type = #tpu.core_type<tc>, window_params = [{pipeline_mode = #tpu.pipeline_mode<synchronous>, transform_indices = @transform_0, window_bounds = array<i64: 8, 8, 32>}, {pipeline_mode = #tpu.pipeline_mode<synchronous>, transform_indices = @transform_1, window_bounds = array<i64: 32, 128>}, {pipeline_mode = #tpu.pipeline_mode<synchronous>, transform_indices = @transform_2, window_bounds = array<i64: 32, 128>}, {pipeline_mode = #tpu.pipeline_mode<synchronous>, transform_indices = @transform_3, window_bounds = array<i64: 1, 128>}, {pipeline_mode = #tpu.pipeline_mode<synchronous>, transform_indices = @transform_4, window_bounds = array<i64: 32, 128>}, {pipeline_mode = #tpu.pipeline_mode<synchronous>, transform_indices = @transform_5, window_bounds = array<i64: 32, 128>}, {pipeline_mode = #tpu.pipeline_mode<synchronous>, transform_indices = @transform_6, window_bounds = array<i64: 1, 128>}, {pipeline_mode = #tpu.pipeline_mode<synchronous>, transform_indices = @transform_7, window_bounds = array<i64: 2, 8, 32>}, {pipeline_mode = #tpu.pipeline_mode<synchronous>, transform_indices = @transform_8, window_bounds = array<i64: 2, 8, 32>}]} {
    %c0 = arith.constant 0 : index
    %c0_0 = arith.constant 0 : index
    %c0_1 = arith.constant 0 : index
    %0 = vector.load %arg1[%c0, %c0_0, %c0_1] : memref<8x8x32xf32, #tpu.memory_space<vmem>>, vector<8x8x32xf32>
    %1 = vector.shape_cast %0 : vector<8x8x32xf32> to vector<64x32xf32>
    %c0_2 = arith.constant 0 : index
    %c0_3 = arith.constant 0 : index
    %2 = vector.load %arg2[%c0_2, %c0_3] : memref<32x128xf32, #tpu.memory_space<vmem>>, vector<32x128xf32>
    %cst = arith.constant dense<0.000000e+00> : vector<64x128xf32>
    %3 = tpu.matmul %1, %2, %cst {dimension_numbers = #tpu.dot_dimension_numbers<[1], [0], [0], [1], [0, 0, 1, 1], [], []>} : vector<64x32xf32>, vector<32x128xf32>, vector<64x128xf32> -> vector<64x128xf32>
    %c0_4 = arith.constant 0 : index
    %c0_5 = arith.constant 0 : index
    %4 = vector.load %arg4[%c0_4, %c0_5] : memref<1x128xf32, #tpu.memory_space<vmem>>, vector<1x128xf32>
    %5 = vector.broadcast %4 : vector<1x128xf32> to vector<64x128xf32>
    %6 = arith.addf %3, %5 : vector<64x128xf32>
    %7 = vector.shape_cast %6 : vector<64x128xf32> to vector<8x8x128xf32>
    %c0_6 = arith.constant 0 : index
    %c0_7 = arith.constant 0 : index
    %c0_8 = arith.constant 0 : index
    %8 = vector.load %arg11[%c0_6, %c0_7, %c0_8] : memref<8x8x128xf32, #tpu.memory_space<vmem>>, vector<8x8x128xf32>
    tpu.vector_store %arg11[%c0_6, %c0_7, %c0_8], %7 {strides = array<i32>} : memref<8x8x128xf32, #tpu.memory_space<vmem>>, vector<8x8x128xf32>,
    %c0_9 = arith.constant 0 : index
    %c0_10 = arith.constant 0 : index
    %9 = vector.load %arg3[%c0_9, %c0_10] : memref<32x128xf32, #tpu.memory_space<vmem>>, vector<32x128xf32>
    %cst_11 = arith.constant 0.000000e+00 : f32
    %10 = vector.broadcast %cst_11 : f32 to vector<8x32xf32>
    %cst_12 = arith.constant 0.000000e+00 : f32
    %11 = vector.broadcast %cst_12 : f32 to vector<8x32xf32>
    %c0_i32 = arith.constant 0 : i32
    %12 = arith.index_cast %c0_i32 : i32 to index
    %c0_13 = arith.constant 0 : index
    %c0_14 = arith.constant 0 : index
    %13 = vector.load %arg11[%12, %c0_13, %c0_14] : memref<8x8x128xf32, #tpu.memory_space<vmem>>, vector<1x8x128xf32>
    %14 = vector.shape_cast %13 : vector<1x8x128xf32> to vector<8x128xf32>
    %cst_15 = arith.constant dense<0.000000e+00> : vector<8x128xf32>
    %15 = tpu.matmul %10, %9, %cst_15 {dimension_numbers = #tpu.dot_dimension_numbers<[1], [0], [0], [1], [0, 0, 1, 1], [], []>} : vector<8x32xf32>, vector<32x128xf32>, vector<8x128xf32> -> vector<8x128xf32>
    %16 = arith.addf %14, %15 : vector<8x128xf32>
    %17 = arith.negf %16 : vector<8x128xf32>
    %18 = math.exp %17 : vector<8x128xf32>
    %cst_16 = arith.constant 1.000000e+00 : f32
    %19 = vector.broadcast %cst_16 : f32 to vector<8x128xf32>
    %20 = arith.addf %19, %18 : vector<8x128xf32>
    %21 = arith.divf %19, %20 : vector<8x128xf32>
    %22 = math.tanh %16 : vector<8x128xf32>
    %23 = vector.extract_strided_slice %21 {offsets = [0, 0], sizes = [8, 32], strides = [1, 1]} : vector<8x128xf32> to vector<8x32xf32>
    %24 = vector.extract_strided_slice %21 {offsets = [0, 32], sizes = [8, 32], strides = [1, 1]} : vector<8x128xf32> to vector<8x32xf32>
    %25 = vector.extract_strided_slice %22 {offsets = [0, 64], sizes = [8, 32], strides = [1, 1]} : vector<8x128xf32> to vector<8x32xf32>
    %26 = vector.extract_strided_slice %21 {offsets = [0, 96], sizes = [8, 32], strides = [1, 1]} : vector<8x128xf32> to vector<8x32xf32>
    %27 = arith.mulf %24, %11 : vector<8x32xf32>
    %28 = arith.mulf %23, %25 : vector<8x32xf32>
    %29 = arith.addf %27, %28 : vector<8x32xf32>
    %30 = math.tanh %29 : vector<8x32xf32>
    %31 = arith.mulf %26, %30 : vector<8x32xf32>
    %32 = arith.index_cast %c0_i32 : i32 to index
    %c0_17 = arith.constant 0 : index
    %c0_18 = arith.constant 0 : index
    %33 = vector.load %arg10[%32, %c0_17, %c0_18] : memref<8x8x32xf32, #tpu.memory_space<vmem>>, vector<1x8x32xf32>
    %34 = vector.shape_cast %33 : vector<1x8x32xf32> to vector<8x32xf32>
    %35 = vector.shape_cast %31 : vector<8x32xf32> to vector<1x8x32xf32>
    tpu.vector_store %arg10[%32, %c0_17, %c0_18], %35 {strides = array<i32>} : memref<8x8x32xf32, #tpu.memory_space<vmem>>, vector<1x8x32xf32>,
    %c1_i32 = arith.constant 1 : i32
    %36 = arith.index_cast %c1_i32 : i32 to index
    %c0_19 = arith.constant 0 : index
    %c0_20 = arith.constant 0 : index
    %37 = vector.load %arg11[%36, %c0_19, %c0_20] : memref<8x8x128xf32, #tpu.memory_space<vmem>>, vector<1x8x128xf32>
    %38 = vector.shape_cast %37 : vector<1x8x128xf32> to vector<8x128xf32>
    %cst_21 = arith.constant dense<0.000000e+00> : vector<8x128xf32>
    %39 = tpu.matmul %31, %9, %cst_21 {dimension_numbers = #tpu.dot_dimension_numbers<[1], [0], [0], [1], [0, 0, 1, 1], [], []>} : vector<8x32xf32>, vector<32x128xf32>, vector<8x128xf32> -> vector<8x128xf32>
    %40 = arith.addf %38, %39 : vector<8x128xf32>
    %41 = arith.negf %40 : vector<8x128xf32>
    %42 = math.exp %41 : vector<8x128xf32>
    %cst_22 = arith.constant 1.000000e+00 : f32
    %43 = vector.broadcast %cst_22 : f32 to vector<8x128xf32>
    %44 = arith.addf %43, %42 : vector<8x128xf32>
    %45 = arith.divf %43, %44 : vector<8x128xf32>
    %46 = math.tanh %40 : vector<8x128xf32>
    %47 = vector.extract_strided_slice %45 {offsets = [0, 0], sizes = [8, 32], strides = [1, 1]} : vector<8x128xf32> to vector<8x32xf32>
    %48 = vector.extract_strided_slice %45 {offsets = [0, 32], sizes = [8, 32], strides = [1, 1]} : vector<8x128xf32> to vector<8x32xf32>
    %49 = vector.extract_strided_slice %46 {offsets = [0, 64], sizes = [8, 32], strides = [1, 1]} : vector<8x128xf32> to vector<8x32xf32>
    %50 = vector.extract_strided_slice %45 {offsets = [0, 96], sizes = [8, 32], strides = [1, 1]} : vector<8x128xf32> to vector<8x32xf32>
    %51 = arith.mulf %48, %29 : vector<8x32xf32>
    %52 = arith.mulf %47, %49 : vector<8x32xf32>
    %53 = arith.addf %51, %52 : vector<8x32xf32>
    %54 = math.tanh %53 : vector<8x32xf32>
    %55 = arith.mulf %50, %54 : vector<8x32xf32>
    %56 = arith.index_cast %c1_i32 : i32 to index
    %c0_23 = arith.constant 0 : index
    %c0_24 = arith.constant 0 : index
    %57 = vector.load %arg10[%56, %c0_23, %c0_24] : memref<8x8x32xf32, #tpu.memory_space<vmem>>, vector<1x8x32xf32>
    %58 = vector.shape_cast %57 : vector<1x8x32xf32> to vector<8x32xf32>
    %59 = vector.shape_cast %55 : vector<8x32xf32> to vector<1x8x32xf32>
    tpu.vector_store %arg10[%56, %c0_23, %c0_24], %59 {strides = array<i32>} : memref<8x8x32xf32, #tpu.memory_space<vmem>>, vector<1x8x32xf32>,
    %c2_i32 = arith.constant 2 : i32
    %60 = arith.index_cast %c2_i32 : i32 to index
    %c0_25 = arith.constant 0 : index
    %c0_26 = arith.constant 0 : index
    %61 = vector.load %arg11[%60, %c0_25, %c0_26] : memref<8x8x128xf32, #tpu.memory_space<vmem>>, vector<1x8x128xf32>
    %62 = vector.shape_cast %61 : vector<1x8x128xf32> to vector<8x128xf32>
    %cst_27 = arith.constant dense<0.000000e+00> : vector<8x128xf32>
    %63 = tpu.matmul %55, %9, %cst_27 {dimension_numbers = #tpu.dot_dimension_numbers<[1], [0], [0], [1], [0, 0, 1, 1], [], []>} : vector<8x32xf32>, vector<32x128xf32>, vector<8x128xf32> -> vector<8x128xf32>
    %64 = arith.addf %62, %63 : vector<8x128xf32>
    %65 = arith.negf %64 : vector<8x128xf32>
    %66 = math.exp %65 : vector<8x128xf32>
    %cst_28 = arith.constant 1.000000e+00 : f32
    %67 = vector.broadcast %cst_28 : f32 to vector<8x128xf32>
    %68 = arith.addf %67, %66 : vector<8x128xf32>
    %69 = arith.divf %67, %68 : vector<8x128xf32>
    %70 = math.tanh %64 : vector<8x128xf32>
    %71 = vector.extract_strided_slice %69 {offsets = [0, 0], sizes = [8, 32], strides = [1, 1]} : vector<8x128xf32> to vector<8x32xf32>
    %72 = vector.extract_strided_slice %69 {offsets = [0, 32], sizes = [8, 32], strides = [1, 1]} : vector<8x128xf32> to vector<8x32xf32>
    %73 = vector.extract_strided_slice %70 {offsets = [0, 64], sizes = [8, 32], strides = [1, 1]} : vector<8x128xf32> to vector<8x32xf32>
    %74 = vector.extract_strided_slice %69 {offsets = [0, 96], sizes = [8, 32], strides = [1, 1]} : vector<8x128xf32> to vector<8x32xf32>
    %75 = arith.mulf %72, %53 : vector<8x32xf32>
    %76 = arith.mulf %71, %73 : vector<8x32xf32>
    %77 = arith.addf %75, %76 : vector<8x32xf32>
    %78 = math.tanh %77 : vector<8x32xf32>
    %79 = arith.mulf %74, %78 : vector<8x32xf32>
    %80 = arith.index_cast %c2_i32 : i32 to index
    %c0_29 = arith.constant 0 : index
    %c0_30 = arith.constant 0 : index
    %81 = vector.load %arg10[%80, %c0_29, %c0_30] : memref<8x8x32xf32, #tpu.memory_space<vmem>>, vector<1x8x32xf32>
    %82 = vector.shape_cast %81 : vector<1x8x32xf32> to vector<8x32xf32>
    %83 = vector.shape_cast %79 : vector<8x32xf32> to vector<1x8x32xf32>
    tpu.vector_store %arg10[%80, %c0_29, %c0_30], %83 {strides = array<i32>} : memref<8x8x32xf32, #tpu.memory_space<vmem>>, vector<1x8x32xf32>,
    %c3_i32 = arith.constant 3 : i32
    %84 = arith.index_cast %c3_i32 : i32 to index
    %c0_31 = arith.constant 0 : index
    %c0_32 = arith.constant 0 : index
    %85 = vector.load %arg11[%84, %c0_31, %c0_32] : memref<8x8x128xf32, #tpu.memory_space<vmem>>, vector<1x8x128xf32>
    %86 = vector.shape_cast %85 : vector<1x8x128xf32> to vector<8x128xf32>
    %cst_33 = arith.constant dense<0.000000e+00> : vector<8x128xf32>
    %87 = tpu.matmul %79, %9, %cst_33 {dimension_numbers = #tpu.dot_dimension_numbers<[1], [0], [0], [1], [0, 0, 1, 1], [], []>} : vector<8x32xf32>, vector<32x128xf32>, vector<8x128xf32> -> vector<8x128xf32>
    %88 = arith.addf %86, %87 : vector<8x128xf32>
    %89 = arith.negf %88 : vector<8x128xf32>
    %90 = math.exp %89 : vector<8x128xf32>
    %cst_34 = arith.constant 1.000000e+00 : f32
    %91 = vector.broadcast %cst_34 : f32 to vector<8x128xf32>
    %92 = arith.addf %91, %90 : vector<8x128xf32>
    %93 = arith.divf %91, %92 : vector<8x128xf32>
    %94 = math.tanh %88 : vector<8x128xf32>
    %95 = vector.extract_strided_slice %93 {offsets = [0, 0], sizes = [8, 32], strides = [1, 1]} : vector<8x128xf32> to vector<8x32xf32>
    %96 = vector.extract_strided_slice %93 {offsets = [0, 32], sizes = [8, 32], strides = [1, 1]} : vector<8x128xf32> to vector<8x32xf32>
    %97 = vector.extract_strided_slice %94 {offsets = [0, 64], sizes = [8, 32], strides = [1, 1]} : vector<8x128xf32> to vector<8x32xf32>
    %98 = vector.extract_strided_slice %93 {offsets = [0, 96], sizes = [8, 32], strides = [1, 1]} : vector<8x128xf32> to vector<8x32xf32>
    %99 = arith.mulf %96, %77 : vector<8x32xf32>
    %100 = arith.mulf %95, %97 : vector<8x32xf32>
    %101 = arith.addf %99, %100 : vector<8x32xf32>
    %102 = math.tanh %101 : vector<8x32xf32>
    %103 = arith.mulf %98, %102 : vector<8x32xf32>
    %104 = arith.index_cast %c3_i32 : i32 to index
    %c0_35 = arith.constant 0 : index
    %c0_36 = arith.constant 0 : index
    %105 = vector.load %arg10[%104, %c0_35, %c0_36] : memref<8x8x32xf32, #tpu.memory_space<vmem>>, vector<1x8x32xf32>
    %106 = vector.shape_cast %105 : vector<1x8x32xf32> to vector<8x32xf32>
    %107 = vector.shape_cast %103 : vector<8x32xf32> to vector<1x8x32xf32>
    tpu.vector_store %arg10[%104, %c0_35, %c0_36], %107 {strides = array<i32>} : memref<8x8x32xf32, #tpu.memory_space<vmem>>, vector<1x8x32xf32>,
    %c4_i32 = arith.constant 4 : i32
    %108 = arith.index_cast %c4_i32 : i32 to index
    %c0_37 = arith.constant 0 : index
    %c0_38 = arith.constant 0 : index
    %109 = vector.load %arg11[%108, %c0_37, %c0_38] : memref<8x8x128xf32, #tpu.memory_space<vmem>>, vector<1x8x128xf32>
    %110 = vector.shape_cast %109 : vector<1x8x128xf32> to vector<8x128xf32>
    %cst_39 = arith.constant dense<0.000000e+00> : vector<8x128xf32>
    %111 = tpu.matmul %103, %9, %cst_39 {dimension_numbers = #tpu.dot_dimension_numbers<[1], [0], [0], [1], [0, 0, 1, 1], [], []>} : vector<8x32xf32>, vector<32x128xf32>, vector<8x128xf32> -> vector<8x128xf32>
    %112 = arith.addf %110, %111 : vector<8x128xf32>
    %113 = arith.negf %112 : vector<8x128xf32>
    %114 = math.exp %113 : vector<8x128xf32>
    %cst_40 = arith.constant 1.000000e+00 : f32
    %115 = vector.broadcast %cst_40 : f32 to vector<8x128xf32>
    %116 = arith.addf %115, %114 : vector<8x128xf32>
    %117 = arith.divf %115, %116 : vector<8x128xf32>
    %118 = math.tanh %112 : vector<8x128xf32>
    %119 = vector.extract_strided_slice %117 {offsets = [0, 0], sizes = [8, 32], strides = [1, 1]} : vector<8x128xf32> to vector<8x32xf32>
    %120 = vector.extract_strided_slice %117 {offsets = [0, 32], sizes = [8, 32], strides = [1, 1]} : vector<8x128xf32> to vector<8x32xf32>
    %121 = vector.extract_strided_slice %118 {offsets = [0, 64], sizes = [8, 32], strides = [1, 1]} : vector<8x128xf32> to vector<8x32xf32>
    %122 = vector.extract_strided_slice %117 {offsets = [0, 96], sizes = [8, 32], strides = [1, 1]} : vector<8x128xf32> to vector<8x32xf32>
    %123 = arith.mulf %120, %101 : vector<8x32xf32>
    %124 = arith.mulf %119, %121 : vector<8x32xf32>
    %125 = arith.addf %123, %124 : vector<8x32xf32>
    %126 = math.tanh %125 : vector<8x32xf32>
    %127 = arith.mulf %122, %126 : vector<8x32xf32>
    %128 = arith.index_cast %c4_i32 : i32 to index
    %c0_41 = arith.constant 0 : index
    %c0_42 = arith.constant 0 : index
    %129 = vector.load %arg10[%128, %c0_41, %c0_42] : memref<8x8x32xf32, #tpu.memory_space<vmem>>, vector<1x8x32xf32>
    %130 = vector.shape_cast %129 : vector<1x8x32xf32> to vector<8x32xf32>
    %131 = vector.shape_cast %127 : vector<8x32xf32> to vector<1x8x32xf32>
    tpu.vector_store %arg10[%128, %c0_41, %c0_42], %131 {strides = array<i32>} : memref<8x8x32xf32, #tpu.memory_space<vmem>>, vector<1x8x32xf32>,
    %c5_i32 = arith.constant 5 : i32
    %132 = arith.index_cast %c5_i32 : i32 to index
    %c0_43 = arith.constant 0 : index
    %c0_44 = arith.constant 0 : index
    %133 = vector.load %arg11[%132, %c0_43, %c0_44] : memref<8x8x128xf32, #tpu.memory_space<vmem>>, vector<1x8x128xf32>
    %134 = vector.shape_cast %133 : vector<1x8x128xf32> to vector<8x128xf32>
    %cst_45 = arith.constant dense<0.000000e+00> : vector<8x128xf32>
    %135 = tpu.matmul %127, %9, %cst_45 {dimension_numbers = #tpu.dot_dimension_numbers<[1], [0], [0], [1], [0, 0, 1, 1], [], []>} : vector<8x32xf32>, vector<32x128xf32>, vector<8x128xf32> -> vector<8x128xf32>
    %136 = arith.addf %134, %135 : vector<8x128xf32>
    %137 = arith.negf %136 : vector<8x128xf32>
    %138 = math.exp %137 : vector<8x128xf32>
    %cst_46 = arith.constant 1.000000e+00 : f32
    %139 = vector.broadcast %cst_46 : f32 to vector<8x128xf32>
    %140 = arith.addf %139, %138 : vector<8x128xf32>
    %141 = arith.divf %139, %140 : vector<8x128xf32>
    %142 = math.tanh %136 : vector<8x128xf32>
    %143 = vector.extract_strided_slice %141 {offsets = [0, 0], sizes = [8, 32], strides = [1, 1]} : vector<8x128xf32> to vector<8x32xf32>
    %144 = vector.extract_strided_slice %141 {offsets = [0, 32], sizes = [8, 32], strides = [1, 1]} : vector<8x128xf32> to vector<8x32xf32>
    %145 = vector.extract_strided_slice %142 {offsets = [0, 64], sizes = [8, 32], strides = [1, 1]} : vector<8x128xf32> to vector<8x32xf32>
    %146 = vector.extract_strided_slice %141 {offsets = [0, 96], sizes = [8, 32], strides = [1, 1]} : vector<8x128xf32> to vector<8x32xf32>
    %147 = arith.mulf %144, %125 : vector<8x32xf32>
    %148 = arith.mulf %143, %145 : vector<8x32xf32>
    %149 = arith.addf %147, %148 : vector<8x32xf32>
    %150 = math.tanh %149 : vector<8x32xf32>
    %151 = arith.mulf %146, %150 : vector<8x32xf32>
    %152 = arith.index_cast %c5_i32 : i32 to index
    %c0_47 = arith.constant 0 : index
    %c0_48 = arith.constant 0 : index
    %153 = vector.load %arg10[%152, %c0_47, %c0_48] : memref<8x8x32xf32, #tpu.memory_space<vmem>>, vector<1x8x32xf32>
    %154 = vector.shape_cast %153 : vector<1x8x32xf32> to vector<8x32xf32>
    %155 = vector.shape_cast %151 : vector<8x32xf32> to vector<1x8x32xf32>
    tpu.vector_store %arg10[%152, %c0_47, %c0_48], %155 {strides = array<i32>} : memref<8x8x32xf32, #tpu.memory_space<vmem>>, vector<1x8x32xf32>,
    %c6_i32 = arith.constant 6 : i32
    %156 = arith.index_cast %c6_i32 : i32 to index
    %c0_49 = arith.constant 0 : index
    %c0_50 = arith.constant 0 : index
    %157 = vector.load %arg11[%156, %c0_49, %c0_50] : memref<8x8x128xf32, #tpu.memory_space<vmem>>, vector<1x8x128xf32>
    %158 = vector.shape_cast %157 : vector<1x8x128xf32> to vector<8x128xf32>
    %cst_51 = arith.constant dense<0.000000e+00> : vector<8x128xf32>
    %159 = tpu.matmul %151, %9, %cst_51 {dimension_numbers = #tpu.dot_dimension_numbers<[1], [0], [0], [1], [0, 0, 1, 1], [], []>} : vector<8x32xf32>, vector<32x128xf32>, vector<8x128xf32> -> vector<8x128xf32>
    %160 = arith.addf %158, %159 : vector<8x128xf32>
    %161 = arith.negf %160 : vector<8x128xf32>
    %162 = math.exp %161 : vector<8x128xf32>
    %cst_52 = arith.constant 1.000000e+00 : f32
    %163 = vector.broadcast %cst_52 : f32 to vector<8x128xf32>
    %164 = arith.addf %163, %162 : vector<8x128xf32>
    %165 = arith.divf %163, %164 : vector<8x128xf32>
    %166 = math.tanh %160 : vector<8x128xf32>
    %167 = vector.extract_strided_slice %165 {offsets = [0, 0], sizes = [8, 32], strides = [1, 1]} : vector<8x128xf32> to vector<8x32xf32>
    %168 = vector.extract_strided_slice %165 {offsets = [0, 32], sizes = [8, 32], strides = [1, 1]} : vector<8x128xf32> to vector<8x32xf32>
    %169 = vector.extract_strided_slice %166 {offsets = [0, 64], sizes = [8, 32], strides = [1, 1]} : vector<8x128xf32> to vector<8x32xf32>
    %170 = vector.extract_strided_slice %165 {offsets = [0, 96], sizes = [8, 32], strides = [1, 1]} : vector<8x128xf32> to vector<8x32xf32>
    %171 = arith.mulf %168, %149 : vector<8x32xf32>
    %172 = arith.mulf %167, %169 : vector<8x32xf32>
    %173 = arith.addf %171, %172 : vector<8x32xf32>
    %174 = math.tanh %173 : vector<8x32xf32>
    %175 = arith.mulf %170, %174 : vector<8x32xf32>
    %176 = arith.index_cast %c6_i32 : i32 to index
    %c0_53 = arith.constant 0 : index
    %c0_54 = arith.constant 0 : index
    %177 = vector.load %arg10[%176, %c0_53, %c0_54] : memref<8x8x32xf32, #tpu.memory_space<vmem>>, vector<1x8x32xf32>
    %178 = vector.shape_cast %177 : vector<1x8x32xf32> to vector<8x32xf32>
    %179 = vector.shape_cast %175 : vector<8x32xf32> to vector<1x8x32xf32>
    tpu.vector_store %arg10[%176, %c0_53, %c0_54], %179 {strides = array<i32>} : memref<8x8x32xf32, #tpu.memory_space<vmem>>, vector<1x8x32xf32>,
    %c7_i32 = arith.constant 7 : i32
    %180 = arith.index_cast %c7_i32 : i32 to index
    %c0_55 = arith.constant 0 : index
    %c0_56 = arith.constant 0 : index
    %181 = vector.load %arg11[%180, %c0_55, %c0_56] : memref<8x8x128xf32, #tpu.memory_space<vmem>>, vector<1x8x128xf32>
    %182 = vector.shape_cast %181 : vector<1x8x128xf32> to vector<8x128xf32>
    %cst_57 = arith.constant dense<0.000000e+00> : vector<8x128xf32>
    %183 = tpu.matmul %175, %9, %cst_57 {dimension_numbers = #tpu.dot_dimension_numbers<[1], [0], [0], [1], [0, 0, 1, 1], [], []>} : vector<8x32xf32>, vector<32x128xf32>, vector<8x128xf32> -> vector<8x128xf32>
    %184 = arith.addf %182, %183 : vector<8x128xf32>
    %185 = arith.negf %184 : vector<8x128xf32>
    %186 = math.exp %185 : vector<8x128xf32>
    %cst_58 = arith.constant 1.000000e+00 : f32
    %187 = vector.broadcast %cst_58 : f32 to vector<8x128xf32>
    %188 = arith.addf %187, %186 : vector<8x128xf32>
    %189 = arith.divf %187, %188 : vector<8x128xf32>
    %190 = math.tanh %184 : vector<8x128xf32>
    %191 = vector.extract_strided_slice %189 {offsets = [0, 0], sizes = [8, 32], strides = [1, 1]} : vector<8x128xf32> to vector<8x32xf32>
    %192 = vector.extract_strided_slice %189 {offsets = [0, 32], sizes = [8, 32], strides = [1, 1]} : vector<8x128xf32> to vector<8x32xf32>
    %193 = vector.extract_strided_slice %190 {offsets = [0, 64], sizes = [8, 32], strides = [1, 1]} : vector<8x128xf32> to vector<8x32xf32>
    %194 = vector.extract_strided_slice %189 {offsets = [0, 96], sizes = [8, 32], strides = [1, 1]} : vector<8x128xf32> to vector<8x32xf32>
    %195 = arith.mulf %192, %173 : vector<8x32xf32>
    %196 = arith.mulf %191, %193 : vector<8x32xf32>
    %197 = arith.addf %195, %196 : vector<8x32xf32>
    %198 = math.tanh %197 : vector<8x32xf32>
    %199 = arith.mulf %194, %198 : vector<8x32xf32>
    %200 = arith.index_cast %c7_i32 : i32 to index
    %c0_59 = arith.constant 0 : index
    %c0_60 = arith.constant 0 : index
    %201 = vector.load %arg10[%200, %c0_59, %c0_60] : memref<8x8x32xf32, #tpu.memory_space<vmem>>, vector<1x8x32xf32>
    %202 = vector.shape_cast %201 : vector<1x8x32xf32> to vector<8x32xf32>
    %203 = vector.shape_cast %199 : vector<8x32xf32> to vector<1x8x32xf32>
    tpu.vector_store %arg10[%200, %c0_59, %c0_60], %203 {strides = array<i32>} : memref<8x8x32xf32, #tpu.memory_space<vmem>>, vector<1x8x32xf32>,
    %c8_i32 = arith.constant 8 : i32
    %c0_61 = arith.constant 0 : index
    %c0_62 = arith.constant 0 : index
    %c0_63 = arith.constant 0 : index
    %204 = vector.load %arg8[%c0_61, %c0_62, %c0_63] : memref<2x8x32xf32, #tpu.memory_space<vmem>>, vector<1x8x32xf32>
    %205 = vector.shape_cast %204 : vector<1x8x32xf32> to vector<8x32xf32>
    %206 = vector.shape_cast %199 : vector<8x32xf32> to vector<1x8x32xf32>
    tpu.vector_store %arg8[%c0_61, %c0_62, %c0_63], %206 {strides = array<i32>} : memref<2x8x32xf32, #tpu.memory_space<vmem>>, vector<1x8x32xf32>,
    %c0_64 = arith.constant 0 : index
    %c0_65 = arith.constant 0 : index
    %c0_66 = arith.constant 0 : index
    %207 = vector.load %arg9[%c0_64, %c0_65, %c0_66] : memref<2x8x32xf32, #tpu.memory_space<vmem>>, vector<1x8x32xf32>
    %208 = vector.shape_cast %207 : vector<1x8x32xf32> to vector<8x32xf32>
    %209 = vector.shape_cast %197 : vector<8x32xf32> to vector<1x8x32xf32>
    tpu.vector_store %arg9[%c0_64, %c0_65, %c0_66], %209 {strides = array<i32>} : memref<2x8x32xf32, #tpu.memory_space<vmem>>, vector<1x8x32xf32>,
    %c0_67 = arith.constant 0 : index
    %c0_68 = arith.constant 0 : index
    %c0_69 = arith.constant 0 : index
    %210 = vector.load %arg10[%c0_67, %c0_68, %c0_69] : memref<8x8x32xf32, #tpu.memory_space<vmem>>, vector<8x8x32xf32>
    %211 = vector.shape_cast %210 : vector<8x8x32xf32> to vector<64x32xf32>
    %c0_70 = arith.constant 0 : index
    %c0_71 = arith.constant 0 : index
    %212 = vector.load %arg5[%c0_70, %c0_71] : memref<32x128xf32, #tpu.memory_space<vmem>>, vector<32x128xf32>
    %cst_72 = arith.constant dense<0.000000e+00> : vector<64x128xf32>
    %213 = tpu.matmul %211, %212, %cst_72 {dimension_numbers = #tpu.dot_dimension_numbers<[1], [0], [0], [1], [0, 0, 1, 1], [], []>} : vector<64x32xf32>, vector<32x128xf32>, vector<64x128xf32> -> vector<64x128xf32>
    %c0_73 = arith.constant 0 : index
    %c0_74 = arith.constant 0 : index
    %214 = vector.load %arg7[%c0_73, %c0_74] : memref<1x128xf32, #tpu.memory_space<vmem>>, vector<1x128xf32>
    %215 = vector.broadcast %214 : vector<1x128xf32> to vector<64x128xf32>
    %216 = arith.addf %213, %215 : vector<64x128xf32>
    %217 = vector.shape_cast %216 : vector<64x128xf32> to vector<8x8x128xf32>
    %c0_75 = arith.constant 0 : index
    %c0_76 = arith.constant 0 : index
    %c0_77 = arith.constant 0 : index
    %218 = vector.load %arg11[%c0_75, %c0_76, %c0_77] : memref<8x8x128xf32, #tpu.memory_space<vmem>>, vector<8x8x128xf32>
    tpu.vector_store %arg11[%c0_75, %c0_76, %c0_77], %217 {strides = array<i32>} : memref<8x8x128xf32, #tpu.memory_space<vmem>>, vector<8x8x128xf32>,
    %c0_78 = arith.constant 0 : index
    %c0_79 = arith.constant 0 : index
    %219 = vector.load %arg6[%c0_78, %c0_79] : memref<32x128xf32, #tpu.memory_space<vmem>>, vector<32x128xf32>
    %cst_80 = arith.constant 0.000000e+00 : f32
    %220 = vector.broadcast %cst_80 : f32 to vector<8x32xf32>
    %cst_81 = arith.constant 0.000000e+00 : f32
    %221 = vector.broadcast %cst_81 : f32 to vector<8x32xf32>
    %c0_i32_82 = arith.constant 0 : i32
    %222 = arith.index_cast %c0_i32_82 : i32 to index
    %c0_83 = arith.constant 0 : index
    %c0_84 = arith.constant 0 : index
    %223 = vector.load %arg11[%222, %c0_83, %c0_84] : memref<8x8x128xf32, #tpu.memory_space<vmem>>, vector<1x8x128xf32>
    %224 = vector.shape_cast %223 : vector<1x8x128xf32> to vector<8x128xf32>
    %cst_85 = arith.constant dense<0.000000e+00> : vector<8x128xf32>
    %225 = tpu.matmul %220, %219, %cst_85 {dimension_numbers = #tpu.dot_dimension_numbers<[1], [0], [0], [1], [0, 0, 1, 1], [], []>} : vector<8x32xf32>, vector<32x128xf32>, vector<8x128xf32> -> vector<8x128xf32>
    %226 = arith.addf %224, %225 : vector<8x128xf32>
    %227 = arith.negf %226 : vector<8x128xf32>
    %228 = math.exp %227 : vector<8x128xf32>
    %cst_86 = arith.constant 1.000000e+00 : f32
    %229 = vector.broadcast %cst_86 : f32 to vector<8x128xf32>
    %230 = arith.addf %229, %228 : vector<8x128xf32>
    %231 = arith.divf %229, %230 : vector<8x128xf32>
    %232 = math.tanh %226 : vector<8x128xf32>
    %233 = vector.extract_strided_slice %231 {offsets = [0, 0], sizes = [8, 32], strides = [1, 1]} : vector<8x128xf32> to vector<8x32xf32>
    %234 = vector.extract_strided_slice %231 {offsets = [0, 32], sizes = [8, 32], strides = [1, 1]} : vector<8x128xf32> to vector<8x32xf32>
    %235 = vector.extract_strided_slice %232 {offsets = [0, 64], sizes = [8, 32], strides = [1, 1]} : vector<8x128xf32> to vector<8x32xf32>
    %236 = vector.extract_strided_slice %231 {offsets = [0, 96], sizes = [8, 32], strides = [1, 1]} : vector<8x128xf32> to vector<8x32xf32>
    %237 = arith.mulf %234, %221 : vector<8x32xf32>
    %238 = arith.mulf %233, %235 : vector<8x32xf32>
    %239 = arith.addf %237, %238 : vector<8x32xf32>
    %240 = math.tanh %239 : vector<8x32xf32>
    %241 = arith.mulf %236, %240 : vector<8x32xf32>
    %c1_i32_87 = arith.constant 1 : i32
    %242 = arith.index_cast %c1_i32_87 : i32 to index
    %c0_88 = arith.constant 0 : index
    %c0_89 = arith.constant 0 : index
    %243 = vector.load %arg11[%242, %c0_88, %c0_89] : memref<8x8x128xf32, #tpu.memory_space<vmem>>, vector<1x8x128xf32>
    %244 = vector.shape_cast %243 : vector<1x8x128xf32> to vector<8x128xf32>
    %cst_90 = arith.constant dense<0.000000e+00> : vector<8x128xf32>
    %245 = tpu.matmul %241, %219, %cst_90 {dimension_numbers = #tpu.dot_dimension_numbers<[1], [0], [0], [1], [0, 0, 1, 1], [], []>} : vector<8x32xf32>, vector<32x128xf32>, vector<8x128xf32> -> vector<8x128xf32>
    %246 = arith.addf %244, %245 : vector<8x128xf32>
    %247 = arith.negf %246 : vector<8x128xf32>
    %248 = math.exp %247 : vector<8x128xf32>
    %cst_91 = arith.constant 1.000000e+00 : f32
    %249 = vector.broadcast %cst_91 : f32 to vector<8x128xf32>
    %250 = arith.addf %249, %248 : vector<8x128xf32>
    %251 = arith.divf %249, %250 : vector<8x128xf32>
    %252 = math.tanh %246 : vector<8x128xf32>
    %253 = vector.extract_strided_slice %251 {offsets = [0, 0], sizes = [8, 32], strides = [1, 1]} : vector<8x128xf32> to vector<8x32xf32>
    %254 = vector.extract_strided_slice %251 {offsets = [0, 32], sizes = [8, 32], strides = [1, 1]} : vector<8x128xf32> to vector<8x32xf32>
    %255 = vector.extract_strided_slice %252 {offsets = [0, 64], sizes = [8, 32], strides = [1, 1]} : vector<8x128xf32> to vector<8x32xf32>
    %256 = vector.extract_strided_slice %251 {offsets = [0, 96], sizes = [8, 32], strides = [1, 1]} : vector<8x128xf32> to vector<8x32xf32>
    %257 = arith.mulf %254, %239 : vector<8x32xf32>
    %258 = arith.mulf %253, %255 : vector<8x32xf32>
    %259 = arith.addf %257, %258 : vector<8x32xf32>
    %260 = math.tanh %259 : vector<8x32xf32>
    %261 = arith.mulf %256, %260 : vector<8x32xf32>
    %c2_i32_92 = arith.constant 2 : i32
    %262 = arith.index_cast %c2_i32_92 : i32 to index
    %c0_93 = arith.constant 0 : index
    %c0_94 = arith.constant 0 : index
    %263 = vector.load %arg11[%262, %c0_93, %c0_94] : memref<8x8x128xf32, #tpu.memory_space<vmem>>, vector<1x8x128xf32>
    %264 = vector.shape_cast %263 : vector<1x8x128xf32> to vector<8x128xf32>
    %cst_95 = arith.constant dense<0.000000e+00> : vector<8x128xf32>
    %265 = tpu.matmul %261, %219, %cst_95 {dimension_numbers = #tpu.dot_dimension_numbers<[1], [0], [0], [1], [0, 0, 1, 1], [], []>} : vector<8x32xf32>, vector<32x128xf32>, vector<8x128xf32> -> vector<8x128xf32>
    %266 = arith.addf %264, %265 : vector<8x128xf32>
    %267 = arith.negf %266 : vector<8x128xf32>
    %268 = math.exp %267 : vector<8x128xf32>
    %cst_96 = arith.constant 1.000000e+00 : f32
    %269 = vector.broadcast %cst_96 : f32 to vector<8x128xf32>
    %270 = arith.addf %269, %268 : vector<8x128xf32>
    %271 = arith.divf %269, %270 : vector<8x128xf32>
    %272 = math.tanh %266 : vector<8x128xf32>
    %273 = vector.extract_strided_slice %271 {offsets = [0, 0], sizes = [8, 32], strides = [1, 1]} : vector<8x128xf32> to vector<8x32xf32>
    %274 = vector.extract_strided_slice %271 {offsets = [0, 32], sizes = [8, 32], strides = [1, 1]} : vector<8x128xf32> to vector<8x32xf32>
    %275 = vector.extract_strided_slice %272 {offsets = [0, 64], sizes = [8, 32], strides = [1, 1]} : vector<8x128xf32> to vector<8x32xf32>
    %276 = vector.extract_strided_slice %271 {offsets = [0, 96], sizes = [8, 32], strides = [1, 1]} : vector<8x128xf32> to vector<8x32xf32>
    %277 = arith.mulf %274, %259 : vector<8x32xf32>
    %278 = arith.mulf %273, %275 : vector<8x32xf32>
    %279 = arith.addf %277, %278 : vector<8x32xf32>
    %280 = math.tanh %279 : vector<8x32xf32>
    %281 = arith.mulf %276, %280 : vector<8x32xf32>
    %c3_i32_97 = arith.constant 3 : i32
    %282 = arith.index_cast %c3_i32_97 : i32 to index
    %c0_98 = arith.constant 0 : index
    %c0_99 = arith.constant 0 : index
    %283 = vector.load %arg11[%282, %c0_98, %c0_99] : memref<8x8x128xf32, #tpu.memory_space<vmem>>, vector<1x8x128xf32>
    %284 = vector.shape_cast %283 : vector<1x8x128xf32> to vector<8x128xf32>
    %cst_100 = arith.constant dense<0.000000e+00> : vector<8x128xf32>
    %285 = tpu.matmul %281, %219, %cst_100 {dimension_numbers = #tpu.dot_dimension_numbers<[1], [0], [0], [1], [0, 0, 1, 1], [], []>} : vector<8x32xf32>, vector<32x128xf32>, vector<8x128xf32> -> vector<8x128xf32>
    %286 = arith.addf %284, %285 : vector<8x128xf32>
    %287 = arith.negf %286 : vector<8x128xf32>
    %288 = math.exp %287 : vector<8x128xf32>
    %cst_101 = arith.constant 1.000000e+00 : f32
    %289 = vector.broadcast %cst_101 : f32 to vector<8x128xf32>
    %290 = arith.addf %289, %288 : vector<8x128xf32>
    %291 = arith.divf %289, %290 : vector<8x128xf32>
    %292 = math.tanh %286 : vector<8x128xf32>
    %293 = vector.extract_strided_slice %291 {offsets = [0, 0], sizes = [8, 32], strides = [1, 1]} : vector<8x128xf32> to vector<8x32xf32>
    %294 = vector.extract_strided_slice %291 {offsets = [0, 32], sizes = [8, 32], strides = [1, 1]} : vector<8x128xf32> to vector<8x32xf32>
    %295 = vector.extract_strided_slice %292 {offsets = [0, 64], sizes = [8, 32], strides = [1, 1]} : vector<8x128xf32> to vector<8x32xf32>
    %296 = vector.extract_strided_slice %291 {offsets = [0, 96], sizes = [8, 32], strides = [1, 1]} : vector<8x128xf32> to vector<8x32xf32>
    %297 = arith.mulf %294, %279 : vector<8x32xf32>
    %298 = arith.mulf %293, %295 : vector<8x32xf32>
    %299 = arith.addf %297, %298 : vector<8x32xf32>
    %300 = math.tanh %299 : vector<8x32xf32>
    %301 = arith.mulf %296, %300 : vector<8x32xf32>
    %c4_i32_102 = arith.constant 4 : i32
    %302 = arith.index_cast %c4_i32_102 : i32 to index
    %c0_103 = arith.constant 0 : index
    %c0_104 = arith.constant 0 : index
    %303 = vector.load %arg11[%302, %c0_103, %c0_104] : memref<8x8x128xf32, #tpu.memory_space<vmem>>, vector<1x8x128xf32>
    %304 = vector.shape_cast %303 : vector<1x8x128xf32> to vector<8x128xf32>
    %cst_105 = arith.constant dense<0.000000e+00> : vector<8x128xf32>
    %305 = tpu.matmul %301, %219, %cst_105 {dimension_numbers = #tpu.dot_dimension_numbers<[1], [0], [0], [1], [0, 0, 1, 1], [], []>} : vector<8x32xf32>, vector<32x128xf32>, vector<8x128xf32> -> vector<8x128xf32>
    %306 = arith.addf %304, %305 : vector<8x128xf32>
    %307 = arith.negf %306 : vector<8x128xf32>
    %308 = math.exp %307 : vector<8x128xf32>
    %cst_106 = arith.constant 1.000000e+00 : f32
    %309 = vector.broadcast %cst_106 : f32 to vector<8x128xf32>
    %310 = arith.addf %309, %308 : vector<8x128xf32>
    %311 = arith.divf %309, %310 : vector<8x128xf32>
    %312 = math.tanh %306 : vector<8x128xf32>
    %313 = vector.extract_strided_slice %311 {offsets = [0, 0], sizes = [8, 32], strides = [1, 1]} : vector<8x128xf32> to vector<8x32xf32>
    %314 = vector.extract_strided_slice %311 {offsets = [0, 32], sizes = [8, 32], strides = [1, 1]} : vector<8x128xf32> to vector<8x32xf32>
    %315 = vector.extract_strided_slice %312 {offsets = [0, 64], sizes = [8, 32], strides = [1, 1]} : vector<8x128xf32> to vector<8x32xf32>
    %316 = vector.extract_strided_slice %311 {offsets = [0, 96], sizes = [8, 32], strides = [1, 1]} : vector<8x128xf32> to vector<8x32xf32>
    %317 = arith.mulf %314, %299 : vector<8x32xf32>
    %318 = arith.mulf %313, %315 : vector<8x32xf32>
    %319 = arith.addf %317, %318 : vector<8x32xf32>
    %320 = math.tanh %319 : vector<8x32xf32>
    %321 = arith.mulf %316, %320 : vector<8x32xf32>
    %c5_i32_107 = arith.constant 5 : i32
    %322 = arith.index_cast %c5_i32_107 : i32 to index
    %c0_108 = arith.constant 0 : index
    %c0_109 = arith.constant 0 : index
    %323 = vector.load %arg11[%322, %c0_108, %c0_109] : memref<8x8x128xf32, #tpu.memory_space<vmem>>, vector<1x8x128xf32>
    %324 = vector.shape_cast %323 : vector<1x8x128xf32> to vector<8x128xf32>
    %cst_110 = arith.constant dense<0.000000e+00> : vector<8x128xf32>
    %325 = tpu.matmul %321, %219, %cst_110 {dimension_numbers = #tpu.dot_dimension_numbers<[1], [0], [0], [1], [0, 0, 1, 1], [], []>} : vector<8x32xf32>, vector<32x128xf32>, vector<8x128xf32> -> vector<8x128xf32>
    %326 = arith.addf %324, %325 : vector<8x128xf32>
    %327 = arith.negf %326 : vector<8x128xf32>
    %328 = math.exp %327 : vector<8x128xf32>
    %cst_111 = arith.constant 1.000000e+00 : f32
    %329 = vector.broadcast %cst_111 : f32 to vector<8x128xf32>
    %330 = arith.addf %329, %328 : vector<8x128xf32>
    %331 = arith.divf %329, %330 : vector<8x128xf32>
    %332 = math.tanh %326 : vector<8x128xf32>
    %333 = vector.extract_strided_slice %331 {offsets = [0, 0], sizes = [8, 32], strides = [1, 1]} : vector<8x128xf32> to vector<8x32xf32>
    %334 = vector.extract_strided_slice %331 {offsets = [0, 32], sizes = [8, 32], strides = [1, 1]} : vector<8x128xf32> to vector<8x32xf32>
    %335 = vector.extract_strided_slice %332 {offsets = [0, 64], sizes = [8, 32], strides = [1, 1]} : vector<8x128xf32> to vector<8x32xf32>
    %336 = vector.extract_strided_slice %331 {offsets = [0, 96], sizes = [8, 32], strides = [1, 1]} : vector<8x128xf32> to vector<8x32xf32>
    %337 = arith.mulf %334, %319 : vector<8x32xf32>
    %338 = arith.mulf %333, %335 : vector<8x32xf32>
    %339 = arith.addf %337, %338 : vector<8x32xf32>
    %340 = math.tanh %339 : vector<8x32xf32>
    %341 = arith.mulf %336, %340 : vector<8x32xf32>
    %c6_i32_112 = arith.constant 6 : i32
    %342 = arith.index_cast %c6_i32_112 : i32 to index
    %c0_113 = arith.constant 0 : index
    %c0_114 = arith.constant 0 : index
    %343 = vector.load %arg11[%342, %c0_113, %c0_114] : memref<8x8x128xf32, #tpu.memory_space<vmem>>, vector<1x8x128xf32>
    %344 = vector.shape_cast %343 : vector<1x8x128xf32> to vector<8x128xf32>
    %cst_115 = arith.constant dense<0.000000e+00> : vector<8x128xf32>
    %345 = tpu.matmul %341, %219, %cst_115 {dimension_numbers = #tpu.dot_dimension_numbers<[1], [0], [0], [1], [0, 0, 1, 1], [], []>} : vector<8x32xf32>, vector<32x128xf32>, vector<8x128xf32> -> vector<8x128xf32>
    %346 = arith.addf %344, %345 : vector<8x128xf32>
    %347 = arith.negf %346 : vector<8x128xf32>
    %348 = math.exp %347 : vector<8x128xf32>
    %cst_116 = arith.constant 1.000000e+00 : f32
    %349 = vector.broadcast %cst_116 : f32 to vector<8x128xf32>
    %350 = arith.addf %349, %348 : vector<8x128xf32>
    %351 = arith.divf %349, %350 : vector<8x128xf32>
    %352 = math.tanh %346 : vector<8x128xf32>
    %353 = vector.extract_strided_slice %351 {offsets = [0, 0], sizes = [8, 32], strides = [1, 1]} : vector<8x128xf32> to vector<8x32xf32>
    %354 = vector.extract_strided_slice %351 {offsets = [0, 32], sizes = [8, 32], strides = [1, 1]} : vector<8x128xf32> to vector<8x32xf32>
    %355 = vector.extract_strided_slice %352 {offsets = [0, 64], sizes = [8, 32], strides = [1, 1]} : vector<8x128xf32> to vector<8x32xf32>
    %356 = vector.extract_strided_slice %351 {offsets = [0, 96], sizes = [8, 32], strides = [1, 1]} : vector<8x128xf32> to vector<8x32xf32>
    %357 = arith.mulf %354, %339 : vector<8x32xf32>
    %358 = arith.mulf %353, %355 : vector<8x32xf32>
    %359 = arith.addf %357, %358 : vector<8x32xf32>
    %360 = math.tanh %359 : vector<8x32xf32>
    %361 = arith.mulf %356, %360 : vector<8x32xf32>
    %c7_i32_117 = arith.constant 7 : i32
    %362 = arith.index_cast %c7_i32_117 : i32 to index
    %c0_118 = arith.constant 0 : index
    %c0_119 = arith.constant 0 : index
    %363 = vector.load %arg11[%362, %c0_118, %c0_119] : memref<8x8x128xf32, #tpu.memory_space<vmem>>, vector<1x8x128xf32>
    %364 = vector.shape_cast %363 : vector<1x8x128xf32> to vector<8x128xf32>
    %cst_120 = arith.constant dense<0.000000e+00> : vector<8x128xf32>
    %365 = tpu.matmul %361, %219, %cst_120 {dimension_numbers = #tpu.dot_dimension_numbers<[1], [0], [0], [1], [0, 0, 1, 1], [], []>} : vector<8x32xf32>, vector<32x128xf32>, vector<8x128xf32> -> vector<8x128xf32>
    %366 = arith.addf %364, %365 : vector<8x128xf32>
    %367 = arith.negf %366 : vector<8x128xf32>
    %368 = math.exp %367 : vector<8x128xf32>
    %cst_121 = arith.constant 1.000000e+00 : f32
    %369 = vector.broadcast %cst_121 : f32 to vector<8x128xf32>
    %370 = arith.addf %369, %368 : vector<8x128xf32>
    %371 = arith.divf %369, %370 : vector<8x128xf32>
    %372 = math.tanh %366 : vector<8x128xf32>
    %373 = vector.extract_strided_slice %371 {offsets = [0, 0], sizes = [8, 32], strides = [1, 1]} : vector<8x128xf32> to vector<8x32xf32>
    %374 = vector.extract_strided_slice %371 {offsets = [0, 32], sizes = [8, 32], strides = [1, 1]} : vector<8x128xf32> to vector<8x32xf32>
    %375 = vector.extract_strided_slice %372 {offsets = [0, 64], sizes = [8, 32], strides = [1, 1]} : vector<8x128xf32> to vector<8x32xf32>
    %376 = vector.extract_strided_slice %371 {offsets = [0, 96], sizes = [8, 32], strides = [1, 1]} : vector<8x128xf32> to vector<8x32xf32>
    %377 = arith.mulf %374, %359 : vector<8x32xf32>
    %378 = arith.mulf %373, %375 : vector<8x32xf32>
    %379 = arith.addf %377, %378 : vector<8x32xf32>
    %380 = math.tanh %379 : vector<8x32xf32>
    %381 = arith.mulf %376, %380 : vector<8x32xf32>
    %c8_i32_122 = arith.constant 8 : i32
    %c1 = arith.constant 1 : index
    %c0_123 = arith.constant 0 : index
    %c0_124 = arith.constant 0 : index
    %382 = vector.load %arg8[%c1, %c0_123, %c0_124] : memref<2x8x32xf32, #tpu.memory_space<vmem>>, vector<1x8x32xf32>
    %383 = vector.shape_cast %382 : vector<1x8x32xf32> to vector<8x32xf32>
    %384 = vector.shape_cast %381 : vector<8x32xf32> to vector<1x8x32xf32>
    tpu.vector_store %arg8[%c1, %c0_123, %c0_124], %384 {strides = array<i32>} : memref<2x8x32xf32, #tpu.memory_space<vmem>>, vector<1x8x32xf32>,
    %c1_125 = arith.constant 1 : index
    %c0_126 = arith.constant 0 : index
    %c0_127 = arith.constant 0 : index
    %385 = vector.load %arg9[%c1_125, %c0_126, %c0_127] : memref<2x8x32xf32, #tpu.memory_space<vmem>>, vector<1x8x32xf32>
    %386 = vector.shape_cast %385 : vector<1x8x32xf32> to vector<8x32xf32>
    %387 = vector.shape_cast %379 : vector<8x32xf32> to vector<1x8x32xf32>
    tpu.vector_store %arg9[%c1_125, %c0_126, %c0_127], %387 {strides = array<i32>} : memref<2x8x32xf32, #tpu.memory_space<vmem>>, vector<1x8x32xf32>,
    return
  }
  func.func @transform_0(%arg0: i32) -> (i32, i32, i32) {
    %c0_i32 = arith.constant 0 : i32
    %c0_i32_0 = arith.constant 0 : i32
    %c0_i32_1 = arith.constant 0 : i32
    %c0_i32_2 = arith.constant 0 : i32
    return %c0_i32, %c0_i32_0, %c0_i32_1 : i32, i32, i32
  }
  func.func @transform_1(%arg0: i32) -> (i32, i32) {
    %c0_i32 = arith.constant 0 : i32
    %c0_i32_0 = arith.constant 0 : i32
    %c0_i32_1 = arith.constant 0 : i32
    return %c0_i32, %c0_i32_0 : i32, i32
  }
  func.func @transform_2(%arg0: i32) -> (i32, i32) {
    %c0_i32 = arith.constant 0 : i32
    %c0_i32_0 = arith.constant 0 : i32
    %c0_i32_1 = arith.constant 0 : i32
    return %c0_i32, %c0_i32_0 : i32, i32
  }
  func.func @transform_3(%arg0: i32) -> (i32, i32) {
    %c0_i32 = arith.constant 0 : i32
    %c0_i32_0 = arith.constant 0 : i32
    %c0_i32_1 = arith.constant 0 : i32
    return %c0_i32, %c0_i32_0 : i32, i32
  }
  func.func @transform_4(%arg0: i32) -> (i32, i32) {
    %c0_i32 = arith.constant 0 : i32
    %c0_i32_0 = arith.constant 0 : i32
    %c0_i32_1 = arith.constant 0 : i32
    return %c0_i32, %c0_i32_0 : i32, i32
  }
  func.func @transform_5(%arg0: i32) -> (i32, i32) {
    %c0_i32 = arith.constant 0 : i32
    %c0_i32_0 = arith.constant 0 : i32
    %c0_i32_1 = arith.constant 0 : i32
    return %c0_i32, %c0_i32_0 : i32, i32
  }
  func.func @transform_6(%arg0: i32) -> (i32, i32) {
    %c0_i32 = arith.constant 0 : i32
    %c0_i32_0 = arith.constant 0 : i32
    %c0_i32_1 = arith.constant 0 : i32
    return %c0_i32, %c0_i32_0 : i32, i32
  }
  func.func @transform_7(%arg0: i32) -> (i32, i32, i32) {
    %c0_i32 = arith.constant 0 : i32
    %c0_i32_0 = arith.constant 0 : i32
    %c0_i32_1 = arith.constant 0 : i32
    %c0_i32_2 = arith.constant 0 : i32
    return %c0_i32, %c0_i32_0, %c0_i32_1 : i32, i32, i32
  }
  func.func @transform_8(%arg0: i32) -> (i32, i32, i32) {
    %c0_i32 = arith.constant 0 : i32
    %c0_i32_0 = arith.constant 0 : i32
    %c0_i32_1 = arith.constant 0 : i32
    %c0_i32_2 = arith.constant 0 : i32
    return %c0_i32, %c0_i32_0, %c0_i32_1 : i32, i32, i32
  }
}

</mosaic_0001>

<llo_original>
// kernel: encoder_forward.1
$region0: #{encoder_forward.1}
  #allocation0 [shape = 'u32[]', space=smem, size = 0x4, offset = 0x4, fixed_abs, tag = 'smem constant byte address 0x4 - core index']
  #allocation1 [shape = 'u32[144,128]{1,0:T(1,128)}', space=vmem, size = 0x12000, scoped, tag = 'internal scratch']
  #allocation2 [shape = 'f32[8,8,32]{2,1,0:T(8,128)}', space=vmem, size = 0x8000, scoped, tag = 'scratch operand']
  #allocation3 [shape = 'f32[8,8,128]{2,1,0:T(8,128)}', space=vmem, size = 0x8000, scoped, tag = 'scratch operand']
  %s0 = inlined_call_operand.vmem [shape: f32[8,8,32], index: 0, kind: input, shape index: {}]
  %s1 = inlined_call_operand.vmem [shape: f32[32,128], index: 1, kind: input, shape index: {}]
  %s2 = inlined_call_operand.vmem [shape: f32[32,128], index: 2, kind: input, shape index: {}]
  %s3 = inlined_call_operand.vmem [shape: f32[1,128], index: 3, kind: input, shape index: {}]
  %s4 = inlined_call_operand.vmem [shape: f32[32,128], index: 4, kind: input, shape index: {}]
  %s5 = inlined_call_operand.vmem [shape: f32[32,128], index: 5, kind: input, shape index: {}]
  %s6 = inlined_call_operand.vmem [shape: f32[1,128], index: 6, kind: input, shape index: {}]
  %s7 = inlined_call_operand.vmem [shape: f32[2,8,32], index: 7, kind: output, shape index: {0}]
  %s8 = inlined_call_operand.vmem [shape: f32[2,8,32], index: 8, kind: output, shape index: {1}]
  %9 = xla_tuple %s7, %s8
  %s10 = sld [smem:[#allocation0]]
  $region46: #{encoder_forward.1} parent=0
    _
  %s12 = ssub.s32 1, %s10
  %s13 = scalar_select 0, %s12, %s10
  // Predicated region
  $region2: #{encoder_forward.1} parent=0 // pred_check
    _
  $region3: #{encoder_forward.1} parent=0 // pred_check_branch
    %15 = sbr.rel (0) target = $region5
  $region4: #{encoder_forward.1} parent=0 // pred_region
    _
  $region5: #{encoder_forward.1} parent=0 // pred_fallthru
    _
  // Predicated region
  $region6: #{encoder_forward.1} parent=0 // pred_check
    _
  $region7: #{encoder_forward.1} parent=0 // pred_check_branch
    %17 = sbr.rel (0) target = $region9
  $region8: #{encoder_forward.1} parent=0 // pred_region
    _
  $region9: #{encoder_forward.1} parent=0 // pred_fallthru
    _
  // Predicated region
  $region10: #{encoder_forward.1} parent=0 // pred_check
    _
  $region11: #{encoder_forward.1} parent=0 // pred_check_branch
    %19 = sbr.rel (0) target = $region13
  $region12: #{encoder_forward.1} parent=0 // pred_region
    _
  $region13: #{encoder_forward.1} parent=0 // pred_fallthru
    _
  // Predicated region
  $region14: #{encoder_forward.1} parent=0 // pred_check
    _
  $region15: #{encoder_forward.1} parent=0 // pred_check_branch
    %21 = sbr.rel (0) target = $region17
  $region16: #{encoder_forward.1} parent=0 // pred_region
    _
  $region17: #{encoder_forward.1} parent=0 // pred_fallthru
    _
  // Predicated region
  $region18: #{encoder_forward.1} parent=0 // pred_check
    _
  $region19: #{encoder_forward.1} parent=0 // pred_check_branch
    %23 = sbr.rel (0) target = $region21
  $region20: #{encoder_forward.1} parent=0 // pred_region
    _
  $region21: #{encoder_forward.1} parent=0 // pred_fallthru
    _
  // Predicated region
  $region22: #{encoder_forward.1} parent=0 // pred_check
    _
  $region23: #{encoder_forward.1} parent=0 // pred_check_branch
    %25 = sbr.rel (0) target = $region25
  $region24: #{encoder_forward.1} parent=0 // pred_region
    _
  $region25: #{encoder_forward.1} parent=0 // pred_fallthru
    _
  // Predicated region
  $region26: #{encoder_forward.1} parent=0 // pred_check
    _
  $region27: #{encoder_forward.1} parent=0 // pred_check_branch
    %27 = sbr.rel (0) target = $region29
  $region28: #{encoder_forward.1} parent=0 // pred_region
    _
  $region29: #{encoder_forward.1} parent=0 // pred_fallthru
    _
  %v28 = vld [vmem:[%s0] sm:$0xff]
  %v29 = vld [vmem:[%s0 + $0x8] sm:$0xff]
  %v30 = vld [vmem:[%s0 + $0x10] sm:$0xff]
  %v31 = vld [vmem:[%s0 + $0x18] sm:$0xff]
  %v32 = vld [vmem:[%s0 + $0x20] sm:$0xff]
  %v33 = vld [vmem:[%s0 + $0x28] sm:$0xff]
  %v34 = vld [vmem:[%s0 + $0x30] sm:$0xff]
  %v35 = vld [vmem:[%s0 + $0x38] sm:$0xff]
  %v36 = vld [vmem:[%s1] sm:$0xff]
  %v37 = vld [vmem:[%s1 + $0x8] sm:$0xff]
  %v38 = vld [vmem:[%s1 + $0x10] sm:$0xff]
  %v39 = vld [vmem:[%s1 + $0x18] sm:$0xff]
  %v40 = vld [vmem:[%s3] sm:$0x1]
  %v42 = vlaneseq
  %v43 = vshrl.u32 %v42, 7
  %v44 = vsub.s32 0, %v43
  %v45 = vrot.slane %v40, %v44
  %vm47 = vcmask 261120
  %v49 = vsel %vm47, %v28, 0
  %v52 = vsel %vm47, %v29, 0
  %v55 = vsel %vm47, %v30, 0
  %v58 = vsel %vm47, %v31, 0
  %v61 = vsel %vm47, %v32, 0
  %v64 = vsel %vm47, %v33, 0
  %v67 = vsel %vm47, %v34, 0
  %v70 = vsel %vm47, %v35, 0
  %72 = vmatprep.subr.mxu0 0.0
  %73 = vmatpush1.msra.mxu0 %v36
  %74 = vmatprep.subr.mxu0 0.0
  %75 = vmatpush1.msra.mxu0 %v37
  %76 = vmatprep.subr.mxu0 0.0
  %77 = vmatpush1.msra.mxu0 %v38
  %78 = vmatprep.subr.mxu0 0.0
  %79 = vmatpush1.msra.mxu0 %v39
  %80 = vmatprep.subr.mxu0 0.0
  %81 = vmatpush1.msra.mxu0 0.0
  %82 = vmatprep.subr.mxu0 0.0
  %83 = vmatpush1.msra.mxu0 0.0
  %84 = vmatprep.subr.mxu0 0.0
  %85 = vmatpush1.msra.mxu0 0.0
  %86 = vmatprep.subr.mxu0 0.0
  %87 = vmatpush1.msra.mxu0 0.0
  %88 = vmatprep.subr.mxu0 0.0
  %89 = vmatpush1.msra.mxu0 0.0
  %90 = vmatprep.subr.mxu0 0.0
  %91 = vmatpush1.msra.mxu0 0.0
  %92 = vmatprep.subr.mxu0 0.0
  %93 = vmatpush1.msra.mxu0 0.0
  %94 = vmatprep.subr.mxu0 0.0
  %95 = vmatpush1.msra.mxu0 0.0
  %96 = vmatprep.subr.mxu0 0.0
  %97 = vmatpush1.msra.mxu0 0.0
  %98 = vmatprep.subr.mxu0 0.0
  %99 = vmatpush1.msra.mxu0 0.0
  %100 = vmatprep.subr.mxu0 0.0
  %101 = vmatpush1.msra.mxu0 0.0
  %102 = vmatprep.subr.mxu0 0.0
  %103 = vmatpush1.msra.mxu0 0.0
  %104 = vmatprep.subr.mxu0 0.0
  %105 = vmatpush1.msra.mxu0 0.0
  %106 = vmatprep.subr.mxu0 0.0
  %107 = vmatpush1.msra.mxu0 0.0
  %108 = vmatprep.subr.mxu0 0.0
  %109 = vmatpush1.msra.mxu0 0.0
  %110 = vmatprep.subr.mxu0 0.0
  %111 = vmatpush1.msra.mxu0 0.0
  %112 = vmatprep.subr.mxu0 0.0
  %113 = vmatpush1.msra.mxu0 0.0
  %114 = vmatprep.subr.mxu0 0.0
  %115 = vmatpush1.msra.mxu0 0.0
  %116 = vmatprep.subr.mxu0 0.0
  %117 = vmatpush1.msra.mxu0 0.0
  %118 = vmatprep.subr.mxu0 0.0
  %119 = vmatpush1.msra.mxu0 0.0
  %120 = vmatprep.subr.mxu0 0.0
  %121 = vmatpush1.msra.mxu0 0.0
  %122 = vmatprep.subr.mxu0 0.0
  %123 = vmatpush1.msra.mxu0 0.0
  %124 = vmatprep.subr.mxu0 0.0
  %125 = vmatpush1.msra.mxu0 0.0
  %126 = vmatprep.subr.mxu0 0.0
  %127 = vmatpush1.msra.mxu0 0.0
  %128 = vmatprep.subr.mxu0 0.0
  %129 = vmatpush1.msra.mxu0 0.0
  %130 = vmatprep.subr.mxu0 0.0
  %131 = vmatpush1.msra.mxu0 0.0
  %132 = vmatprep.subr.mxu0 0.0
  %133 = vmatpush1.msra.mxu0 0.0
  %134 = vmatprep.subr.mxu0 0.0
  %135 = vmatpush1.msra.mxu0 0.0
  %136 = vmatprep.mubr.f32.mxu0 0.0
  %137 = vmatmul.mubr.f32.gmra.mrb[0].mxu0 %v49
  %v138 = vpop.f32.mrb[0].mxu0
  %v139 = vadd.f32 %v45, %v138
  %v140 = vpop.f32.mrb[0].mxu0
  %141 = vmatprep.mubr.f32.mxu0 0.0
  %142 = vmatmul.mubr.f32.gmra.mrb[0].mxu0 %v52
  %v143 = vpop.f32.mrb[0].mxu0
  %v144 = vadd.f32 %v45, %v143
  %v145 = vpop.f32.mrb[0].mxu0
  %146 = vmatprep.mubr.f32.mxu0 0.0
  %147 = vmatmul.mubr.f32.gmra.mrb[0].mxu0 %v55
  %v148 = vpop.f32.mrb[0].mxu0
  %v149 = vadd.f32 %v45, %v148
  %v150 = vpop.f32.mrb[0].mxu0
  %151 = vmatprep.mubr.f32.mxu0 0.0
  %152 = vmatmul.mubr.f32.gmra.mrb[0].mxu0 %v58
  %v153 = vpop.f32.mrb[0].mxu0
  %v154 = vadd.f32 %v45, %v153
  %v155 = vpop.f32.mrb[0].mxu0
  %156 = vmatprep.mubr.f32.mxu0 0.0
  %157 = vmatmul.mubr.f32.gmra.mrb[0].mxu0 %v61
  %v158 = vpop.f32.mrb[0].mxu0
  %v159 = vadd.f32 %v45, %v158
  %v160 = vpop.f32.mrb[0].mxu0
  %161 = vmatprep.mubr.f32.mxu0 0.0
  %162 = vmatmul.mubr.f32.gmra.mrb[0].mxu0 %v64
  %v163 = vpop.f32.mrb[0].mxu0
  %v164 = vadd.f32 %v45, %v163
  %v165 = vpop.f32.mrb[0].mxu0
  %166 = vmatprep.mubr.f32.mxu0 0.0
  %167 = vmatmul.mubr.f32.gmra.mrb[0].mxu0 %v67
  %v168 = vpop.f32.mrb[0].mxu0
  %v169 = vadd.f32 %v45, %v168
  %v170 = vpop.f32.mrb[0].mxu0
  %171 = vmatprep.mubr.f32.mxu0 0.0
  %172 = vmatmul.mubr.f32.gmra.mrb[0].mxu0 %v70
  %v173 = vpop.f32.mrb[0].mxu0
  %v174 = vadd.f32 %v45, %v173
  %v175 = vpop.f32.mrb[0].mxu0
  %176 = vdwg.mxu0
  %177 = vst [vmem:[#allocation3] sm:$0xff] %v139
  %178 = vst [vmem:[#allocation3 + $0x8] sm:$0xff] %v144
  %179 = vst [vmem:[#allocation3 + $0x10] sm:$0xff] %v149
  %180 = vst [vmem:[#allocation3 + $0x18] sm:$0xff] %v154
  %181 = vst [vmem:[#allocation3 + $0x20] sm:$0xff] %v159
  %182 = vst [vmem:[#allocation3 + $0x28] sm:$0xff] %v164
  %183 = vst [vmem:[#allocation3 + $0x30] sm:$0xff] %v169
  %184 = vst [vmem:[#allocation3 + $0x38] sm:$0xff] %v174
  %v185 = vld [vmem:[%s2] sm:$0xff]
  %v186 = vld [vmem:[%s2 + $0x8] sm:$0xff]
  %v187 = vld [vmem:[%s2 + $0x10] sm:$0xff]
  %v188 = vld [vmem:[%s2 + $0x18] sm:$0xff]
  %v189 = vld [vmem:[#allocation3] sm:$0xff]
  %v191 = vsel %vm47, 0.0, 0
  %193 = vmatprep.subr.mxu0 0.0
  %194 = vmatpush1.msra.mxu0 %v185
  %195 = vmatprep.subr.mxu0 0.0
  %196 = vmatpush1.msra.mxu0 %v186
  %197 = vmatprep.subr.mxu0 0.0
  %198 = vmatpush1.msra.mxu0 %v187
  %199 = vmatprep.subr.mxu0 0.0
  %200 = vmatpush1.msra.mxu0 %v188
  %201 = vmatprep.subr.mxu0 0.0
  %202 = vmatpush1.msra.mxu0 0.0
  %203 = vmatprep.subr.mxu0 0.0
  %204 = vmatpush1.msra.mxu0 0.0
  %205 = vmatprep.subr.mxu0 0.0
  %206 = vmatpush1.msra.mxu0 0.0
  %207 = vmatprep.subr.mxu0 0.0
  %208 = vmatpush1.msra.mxu0 0.0
  %209 = vmatprep.subr.mxu0 0.0
  %210 = vmatpush1.msra.mxu0 0.0
  %211 = vmatprep.subr.mxu0 0.0
  %212 = vmatpush1.msra.mxu0 0.0
  %213 = vmatprep.subr.mxu0 0.0
  %214 = vmatpush1.msra.mxu0 0.0
  %215 = vmatprep.subr.mxu0 0.0
  %216 = vmatpush1.msra.mxu0 0.0
  %217 = vmatprep.subr.mxu0 0.0
  %218 = vmatpush1.msra.mxu0 0.0
  %219 = vmatprep.subr.mxu0 0.0
  %220 = vmatpush1.msra.mxu0 0.0
  %221 = vmatprep.subr.mxu0 0.0
  %222 = vmatpush1.msra.mxu0 0.0
  %223 = vmatprep.subr.mxu0 0.0
  %224 = vmatpush1.msra.mxu0 0.0
  %225 = vmatprep.subr.mxu0 0.0
  %226 = vmatpush1.msra.mxu0 0.0
  %227 = vmatprep.subr.mxu0 0.0
  %228 = vmatpush1.msra.mxu0 0.0
  %229 = vmatprep.subr.mxu0 0.0
  %230 = vmatpush1.msra.mxu0 0.0
  %231 = vmatprep.subr.mxu0 0.0
  %232 = vmatpush1.msra.mxu0 0.0
  %233 = vmatprep.subr.mxu0 0.0
  %234 = vmatpush1.msra.mxu0 0.0
  %235 = vmatprep.subr.mxu0 0.0
  %236 = vmatpush1.msra.mxu0 0.0
  %237 = vmatprep.subr.mxu0 0.0
  %238 = vmatpush1.msra.mxu0 0.0
  %239 = vmatprep.subr.mxu0 0.0
  %240 = vmatpush1.msra.mxu0 0.0
  %241 = vmatprep.subr.mxu0 0.0
  %242 = vmatpush1.msra.mxu0 0.0
  %243 = vmatprep.subr.mxu0 0.0
  %244 = vmatpush1.msra.mxu0 0.0
  %245 = vmatprep.subr.mxu0 0.0
  %246 = vmatpush1.msra.mxu0 0.0
  %247 = vmatprep.subr.mxu0 0.0
  %248 = vmatpush1.msra.mxu0 0.0
  %249 = vmatprep.subr.mxu0 0.0
  %250 = vmatpush1.msra.mxu0 0.0
  %251 = vmatprep.subr.mxu0 0.0
  %252 = vmatpush1.msra.mxu0 0.0
  %253 = vmatprep.subr.mxu0 0.0
  %254 = vmatpush1.msra.mxu0 0.0
  %255 = vmatprep.subr.mxu0 0.0
  %256 = vmatpush1.msra.mxu0 0.0
  %257 = vmatprep.mubr.f32.mxu0 0.0
  %258 = vmatmul.mubr.f32.gmra.mrb[0].mxu0 %v191
  %v259 = vpop.f32.mrb[0].mxu0
  %v260 = vadd.f32 0.0, %v259
  %v261 = vpop.f32.mrb[0].mxu0
  %262 = vdwg.mxu0
  %v263 = vadd.f32 %v189, %v260
  %v264 = vxor.u32 %v263, 2147483648
  %v265 = vmul.f32 %v264, 1.442695
  %v266 = vpow.pop %v265
  %v267 = vadd.f32 %v266, 1.0
  %v268 = vrcp.pop %v267
  %v269 = vmul.f32 1.0, %v268
  %v270 = vtanh.pop %v263
  %v271 = vmul.f32 %v269, 0.0
  %273 = vrot.lane.b32.xlu0 %v270, 64
  %v274 = vpop.permute.xlu0 %273
  %v276 = vmul.f32 %v269, %v274
  %278 = vrot.lane.b32.xlu0 %v276, 32
  %v279 = vpop.permute.xlu0 %278
  %v281 = vadd.f32 %v271, %v279
  %v282 = vtanh.pop %v281
  %284 = vrot.lane.b32.xlu0 %v282, 64
  %v285 = vpop.permute.xlu0 %284
  %v287 = vmul.f32 %v269, %v285
  %289 = vrot.lane.b32.xlu0 %v287, 32
  %v290 = vpop.permute.xlu0 %289
  %292 = vst.msk [vmem:[#allocation2] sm:$0xff] %vm47, %v290
  %s293 = scalar_lea.vmem [#allocation3], 8
  %v294 = vld [vmem:[%s293] sm:$0xff]
  %v295 = vsel %vm47, %v290, 0
  %297 = vmatprep.subr.mxu0 0.0
  %298 = vmatpush1.msra.mxu0 %v185
  %299 = vmatprep.subr.mxu0 0.0
  %300 = vmatpush1.msra.mxu0 %v186
  %301 = vmatprep.subr.mxu0 0.0
  %302 = vmatpush1.msra.mxu0 %v187
  %303 = vmatprep.subr.mxu0 0.0
  %304 = vmatpush1.msra.mxu0 %v188
  %305 = vmatprep.subr.mxu0 0.0
  %306 = vmatpush1.msra.mxu0 0.0
  %307 = vmatprep.subr.mxu0 0.0
  %308 = vmatpush1.msra.mxu0 0.0
  %309 = vmatprep.subr.mxu0 0.0
  %310 = vmatpush1.msra.mxu0 0.0
  %311 = vmatprep.subr.mxu0 0.0
  %312 = vmatpush1.msra.mxu0 0.0
  %313 = vmatprep.subr.mxu0 0.0
  %314 = vmatpush1.msra.mxu0 0.0
  %315 = vmatprep.subr.mxu0 0.0
  %316 = vmatpush1.msra.mxu0 0.0
  %317 = vmatprep.subr.mxu0 0.0
  %318 = vmatpush1.msra.mxu0 0.0
  %319 = vmatprep.subr.mxu0 0.0
  %320 = vmatpush1.msra.mxu0 0.0
  %321 = vmatprep.subr.mxu0 0.0
  %322 = vmatpush1.msra.mxu0 0.0
  %323 = vmatprep.subr.mxu0 0.0
  %324 = vmatpush1.msra.mxu0 0.0
  %325 = vmatprep.subr.mxu0 0.0
  %326 = vmatpush1.msra.mxu0 0.0
  %327 = vmatprep.subr.mxu0 0.0
  %328 = vmatpush1.msra.mxu0 0.0
  %329 = vmatprep.subr.mxu0 0.0
  %330 = vmatpush1.msra.mxu0 0.0
  %331 = vmatprep.subr.mxu0 0.0
  %332 = vmatpush1.msra.mxu0 0.0
  %333 = vmatprep.subr.mxu0 0.0
  %334 = vmatpush1.msra.mxu0 0.0
  %335 = vmatprep.subr.mxu0 0.0
  %336 = vmatpush1.msra.mxu0 0.0
  %337 = vmatprep.subr.mxu0 0.0
  %338 = vmatpush1.msra.mxu0 0.0
  %339 = vmatprep.subr.mxu0 0.0
  %340 = vmatpush1.msra.mxu0 0.0
  %341 = vmatprep.subr.mxu0 0.0
  %342 = vmatpush1.msra.mxu0 0.0
  %343 = vmatprep.subr.mxu0 0.0
  %344 = vmatpush1.msra.mxu0 0.0
  %345 = vmatprep.subr.mxu0 0.0
  %346 = vmatpush1.msra.mxu0 0.0
  %347 = vmatprep.subr.mxu0 0.0
  %348 = vmatpush1.msra.mxu0 0.0
  %349 = vmatprep.subr.mxu0 0.0
  %350 = vmatpush1.msra.mxu0 0.0
  %351 = vmatprep.subr.mxu0 0.0
  %352 = vmatpush1.msra.mxu0 0.0
  %353 = vmatprep.subr.mxu0 0.0
  %354 = vmatpush1.msra.mxu0 0.0
  %355 = vmatprep.subr.mxu0 0.0
  %356 = vmatpush1.msra.mxu0 0.0
  %357 = vmatprep.subr.mxu0 0.0
  %358 = vmatpush1.msra.mxu0 0.0
  %359 = vmatprep.subr.mxu0 0.0
  %360 = vmatpush1.msra.mxu0 0.0
  %361 = vmatprep.mubr.f32.mxu0 0.0
  %362 = vmatmul.mubr.f32.gmra.mrb[0].mxu0 %v295
  %v363 = vpop.f32.mrb[0].mxu0
  %v364 = vadd.f32 0.0, %v363
  %v365 = vpop.f32.mrb[0].mxu0
  %366 = vdwg.mxu0
  %v367 = vadd.f32 %v294, %v364
  %v368 = vxor.u32 %v367, 2147483648
  %v369 = vmul.f32 %v368, 1.442695
  %v370 = vpow.pop %v369
  %v371 = vadd.f32 %v370, 1.0
  %v372 = vrcp.pop %v371
  %v373 = vmul.f32 1.0, %v372
  %v374 = vtanh.pop %v367
  %v375 = vmul.f32 %v373, %v281
  %377 = vrot.lane.b32.xlu0 %v374, 64
  %v378 = vpop.permute.xlu0 %377
  %v380 = vmul.f32 %v373, %v378
  %382 = vrot.lane.b32.xlu0 %v380, 32
  %v383 = vpop.permute.xlu0 %382
  %v385 = vadd.f32 %v375, %v383
  %v386 = vtanh.pop %v385
  %388 = vrot.lane.b32.xlu0 %v386, 64
  %v389 = vpop.permute.xlu0 %388
  %v391 = vmul.f32 %v373, %v389
  %393 = vrot.lane.b32.xlu0 %v391, 32
  %v394 = vpop.permute.xlu0 %393
  %s396 = scalar_lea.vmem [#allocation2], 8
  %397 = vst.msk [vmem:[%s396] sm:$0xff] %vm47, %v394
  %s398 = scalar_lea.vmem [#allocation3], 16
  %v399 = vld [vmem:[%s398] sm:$0xff]
  %v400 = vsel %vm47, %v394, 0
  %402 = vmatprep.subr.mxu0 0.0
  %403 = vmatpush1.msra.mxu0 %v185
  %404 = vmatprep.subr.mxu0 0.0
  %405 = vmatpush1.msra.mxu0 %v186
  %406 = vmatprep.subr.mxu0 0.0
  %407 = vmatpush1.msra.mxu0 %v187
  %408 = vmatprep.subr.mxu0 0.0
  %409 = vmatpush1.msra.mxu0 %v188
  %410 = vmatprep.subr.mxu0 0.0
  %411 = vmatpush1.msra.mxu0 0.0
  %412 = vmatprep.subr.mxu0 0.0
  %413 = vmatpush1.msra.mxu0 0.0
  %414 = vmatprep.subr.mxu0 0.0
  %415 = vmatpush1.msra.mxu0 0.0
  %416 = vmatprep.subr.mxu0 0.0
  %417 = vmatpush1.msra.mxu0 0.0
  %418 = vmatprep.subr.mxu0 0.0
  %419 = vmatpush1.msra.mxu0 0.0
  %420 = vmatprep.subr.mxu0 0.0
  %421 = vmatpush1.msra.mxu0 0.0
  %422 = vmatprep.subr.mxu0 0.0
  %423 = vmatpush1.msra.mxu0 0.0
  %424 = vmatprep.subr.mxu0 0.0
  %425 = vmatpush1.msra.mxu0 0.0
  %426 = vmatprep.subr.mxu0 0.0
  %427 = vmatpush1.msra.mxu0 0.0
  %428 = vmatprep.subr.mxu0 0.0
  %429 = vmatpush1.msra.mxu0 0.0
  %430 = vmatprep.subr.mxu0 0.0
  %431 = vmatpush1.msra.mxu0 0.0
  %432 = vmatprep.subr.mxu0 0.0
  %433 = vmatpush1.msra.mxu0 0.0
  %434 = vmatprep.subr.mxu0 0.0
  %435 = vmatpush1.msra.mxu0 0.0
  %436 = vmatprep.subr.mxu0 0.0
  %437 = vmatpush1.msra.mxu0 0.0
  %438 = vmatprep.subr.mxu0 0.0
  %439 = vmatpush1.msra.mxu0 0.0
  %440 = vmatprep.subr.mxu0 0.0
  %441 = vmatpush1.msra.mxu0 0.0
  %442 = vmatprep.subr.mxu0 0.0
  %443 = vmatpush1.msra.mxu0 0.0
  %444 = vmatprep.subr.mxu0 0.0
  %445 = vmatpush1.msra.mxu0 0.0
  %446 = vmatprep.subr.mxu0 0.0
  %447 = vmatpush1.msra.mxu0 0.0
  %448 = vmatprep.subr.mxu0 0.0
  %449 = vmatpush1.msra.mxu0 0.0
  %450 = vmatprep.subr.mxu0 0.0
  %451 = vmatpush1.msra.mxu0 0.0
  %452 = vmatprep.subr.mxu0 0.0
  %453 = vmatpush1.msra.mxu0 0.0
  %454 = vmatprep.subr.mxu0 0.0
  %455 = vmatpush1.msra.mxu0 0.0
  %456 = vmatprep.subr.mxu0 0.0
  %457 = vmatpush1.msra.mxu0 0.0
  %458 = vmatprep.subr.mxu0 0.0
  %459 = vmatpush1.msra.mxu0 0.0
  %460 = vmatprep.subr.mxu0 0.0
  %461 = vmatpush1.msra.mxu0 0.0
  %462 = vmatprep.subr.mxu0 0.0
  %463 = vmatpush1.msra.mxu0 0.0
  %464 = vmatprep.subr.mxu0 0.0
  %465 = vmatpush1.msra.mxu0 0.0
  %466 = vmatprep.mubr.f32.mxu0 0.0
  %467 = vmatmul.mubr.f32.gmra.mrb[0].mxu0 %v400
  %v468 = vpop.f32.mrb[0].mxu0
  %v469 = vadd.f32 0.0, %v468
  %v470 = vpop.f32.mrb[0].mxu0
  %471 = vdwg.mxu0
  %v472 = vadd.f32 %v399, %v469
  %v473 = vxor.u32 %v472, 2147483648
  %v474 = vmul.f32 %v473, 1.442695
  %v475 = vpow.pop %v474
  %v476 = vadd.f32 %v475, 1.0
  %v477 = vrcp.pop %v476
  %v478 = vmul.f32 1.0, %v477
  %v479 = vtanh.pop %v472
  %v480 = vmul.f32 %v478, %v385
  %482 = vrot.lane.b32.xlu0 %v479, 64
  %v483 = vpop.permute.xlu0 %482
  %v485 = vmul.f32 %v478, %v483
  %487 = vrot.lane.b32.xlu0 %v485, 32
  %v488 = vpop.permute.xlu0 %487
  %v490 = vadd.f32 %v480, %v488
  %v491 = vtanh.pop %v490
  %493 = vrot.lane.b32.xlu0 %v491, 64
  %v494 = vpop.permute.xlu0 %493
  %v496 = vmul.f32 %v478, %v494
  %498 = vrot.lane.b32.xlu0 %v496, 32
  %v499 = vpop.permute.xlu0 %498
  %s501 = scalar_lea.vmem [#allocation2], 16
  %502 = vst.msk [vmem:[%s501] sm:$0xff] %vm47, %v499
  %s503 = scalar_lea.vmem [#allocation3], 24
  %v504 = vld [vmem:[%s503] sm:$0xff]
  %v505 = vsel %vm47, %v499, 0
  %507 = vmatprep.subr.mxu0 0.0
  %508 = vmatpush1.msra.mxu0 %v185
  %509 = vmatprep.subr.mxu0 0.0
  %510 = vmatpush1.msra.mxu0 %v186
  %511 = vmatprep.subr.mxu0 0.0
  %512 = vmatpush1.msra.mxu0 %v187
  %513 = vmatprep.subr.mxu0 0.0
  %514 = vmatpush1.msra.mxu0 %v188
  %515 = vmatprep.subr.mxu0 0.0
  %516 = vmatpush1.msra.mxu0 0.0
  %517 = vmatprep.subr.mxu0 0.0
  %518 = vmatpush1.msra.mxu0 0.0
  %519 = vmatprep.subr.mxu0 0.0
  %520 = vmatpush1.msra.mxu0 0.0
  %521 = vmatprep.subr.mxu0 0.0
  %522 = vmatpush1.msra.mxu0 0.0
  %523 = vmatprep.subr.mxu0 0.0
  %524 = vmatpush1.msra.mxu0 0.0
  %525 = vmatprep.subr.mxu0 0.0
  %526 = vmatpush1.msra.mxu0 0.0
  %527 = vmatprep.subr.mxu0 0.0
  %528 = vmatpush1.msra.mxu0 0.0
  %529 = vmatprep.subr.mxu0 0.0
  %530 = vmatpush1.msra.mxu0 0.0
  %531 = vmatprep.subr.mxu0 0.0
  %532 = vmatpush1.msra.mxu0 0.0
  %533 = vmatprep.subr.mxu0 0.0
  %534 = vmatpush1.msra.mxu0 0.0
  %535 = vmatprep.subr.mxu0 0.0
  %536 = vmatpush1.msra.mxu0 0.0
  %537 = vmatprep.subr.mxu0 0.0
  %538 = vmatpush1.msra.mxu0 0.0
  %539 = vmatprep.subr.mxu0 0.0
  %540 = vmatpush1.msra.mxu0 0.0
  %541 = vmatprep.subr.mxu0 0.0
  %542 = vmatpush1.msra.mxu0 0.0
  %543 = vmatprep.subr.mxu0 0.0
  %544 = vmatpush1.msra.mxu0 0.0
  %545 = vmatprep.subr.mxu0 0.0
  %546 = vmatpush1.msra.mxu0 0.0
  %547 = vmatprep.subr.mxu0 0.0
  %548 = vmatpush1.msra.mxu0 0.0
  %549 = vmatprep.subr.mxu0 0.0
  %550 = vmatpush1.msra.mxu0 0.0
  %551 = vmatprep.subr.mxu0 0.0
  %552 = vmatpush1.msra.mxu0 0.0
  %553 = vmatprep.subr.mxu0 0.0
  %554 = vmatpush1.msra.mxu0 0.0
  %555 = vmatprep.subr.mxu0 0.0
  %556 = vmatpush1.msra.mxu0 0.0
  %557 = vmatprep.subr.mxu0 0.0
  %558 = vmatpush1.msra.mxu0 0.0
  %559 = vmatprep.subr.mxu0 0.0
  %560 = vmatpush1.msra.mxu0 0.0
  %561 = vmatprep.subr.mxu0 0.0
  %562 = vmatpush1.msra.mxu0 0.0
  %563 = vmatprep.subr.mxu0 0.0
  %564 = vmatpush1.msra.mxu0 0.0
  %565 = vmatprep.subr.mxu0 0.0
  %566 = vmatpush1.msra.mxu0 0.0
  %567 = vmatprep.subr.mxu0 0.0
  %568 = vmatpush1.msra.mxu0 0.0
  %569 = vmatprep.subr.mxu0 0.0
  %570 = vmatpush1.msra.mxu0 0.0
  %571 = vmatprep.mubr.f32.mxu0 0.0
  %572 = vmatmul.mubr.f32.gmra.mrb[0].mxu0 %v505
  %v573 = vpop.f32.mrb[0].mxu0
  %v574 = vadd.f32 0.0, %v573
  %v575 = vpop.f32.mrb[0].mxu0
  %576 = vdwg.mxu0
  %v577 = vadd.f32 %v504, %v574
  %v578 = vxor.u32 %v577, 2147483648
  %v579 = vmul.f32 %v578, 1.442695
  %v580 = vpow.pop %v579
  %v581 = vadd.f32 %v580, 1.0
  %v582 = vrcp.pop %v581
  %v583 = vmul.f32 1.0, %v582
  %v584 = vtanh.pop %v577
  %v585 = vmul.f32 %v583, %v490
  %587 = vrot.lane.b32.xlu0 %v584, 64
  %v588 = vpop.permute.xlu0 %587
  %v590 = vmul.f32 %v583, %v588
  %592 = vrot.lane.b32.xlu0 %v590, 32
  %v593 = vpop.permute.xlu0 %592
  %v595 = vadd.f32 %v585, %v593
  %v596 = vtanh.pop %v595
  %598 = vrot.lane.b32.xlu0 %v596, 64
  %v599 = vpop.permute.xlu0 %598
  %v601 = vmul.f32 %v583, %v599
  %603 = vrot.lane.b32.xlu0 %v601, 32
  %v604 = vpop.permute.xlu0 %603
  %s606 = scalar_lea.vmem [#allocation2], 24
  %607 = vst.msk [vmem:[%s606] sm:$0xff] %vm47, %v604
  %s608 = scalar_lea.vmem [#allocation3], 32
  %v609 = vld [vmem:[%s608] sm:$0xff]
  %v610 = vsel %vm47, %v604, 0
  %612 = vmatprep.subr.mxu0 0.0
  %613 = vmatpush1.msra.mxu0 %v185
  %614 = vmatprep.subr.mxu0 0.0
  %615 = vmatpush1.msra.mxu0 %v186
  %616 = vmatprep.subr.mxu0 0.0
  %617 = vmatpush1.msra.mxu0 %v187
  %618 = vmatprep.subr.mxu0 0.0
  %619 = vmatpush1.msra.mxu0 %v188
  %620 = vmatprep.subr.mxu0 0.0
  %621 = vmatpush1.msra.mxu0 0.0
  %622 = vmatprep.subr.mxu0 0.0
  %623 = vmatpush1.msra.mxu0 0.0
  %624 = vmatprep.subr.mxu0 0.0
  %625 = vmatpush1.msra.mxu0 0.0
  %626 = vmatprep.subr.mxu0 0.0
  %627 = vmatpush1.msra.mxu0 0.0
  %628 = vmatprep.subr.mxu0 0.0
  %629 = vmatpush1.msra.mxu0 0.0
  %630 = vmatprep.subr.mxu0 0.0
  %631 = vmatpush1.msra.mxu0 0.0
  %632 = vmatprep.subr.mxu0 0.0
  %633 = vmatpush1.msra.mxu0 0.0
  %634 = vmatprep.subr.mxu0 0.0
  %635 = vmatpush1.msra.mxu0 0.0
  %636 = vmatprep.subr.mxu0 0.0
  %637 = vmatpush1.msra.mxu0 0.0
  %638 = vmatprep.subr.mxu0 0.0
  %639 = vmatpush1.msra.mxu0 0.0
  %640 = vmatprep.subr.mxu0 0.0
  %641 = vmatpush1.msra.mxu0 0.0
  %642 = vmatprep.subr.mxu0 0.0
  %643 = vmatpush1.msra.mxu0 0.0
  %644 = vmatprep.subr.mxu0 0.0
  %645 = vmatpush1.msra.mxu0 0.0
  %646 = vmatprep.subr.mxu0 0.0
  %647 = vmatpush1.msra.mxu0 0.0
  %648 = vmatprep.subr.mxu0 0.0
  %649 = vmatpush1.msra.mxu0 0.0
  %650 = vmatprep.subr.mxu0 0.0
  %651 = vmatpush1.msra.mxu0 0.0
  %652 = vmatprep.subr.mxu0 0.0
  %653 = vmatpush1.msra.mxu0 0.0
  %654 = vmatprep.subr.mxu0 0.0
  %655 = vmatpush1.msra.mxu0 0.0
  %656 = vmatprep.subr.mxu0 0.0
  %657 = vmatpush1.msra.mxu0 0.0
  %658 = vmatprep.subr.mxu0 0.0
  %659 = vmatpush1.msra.mxu0 0.0
  %660 = vmatprep.subr.mxu0 0.0
  %661 = vmatpush1.msra.mxu0 0.0
  %662 = vmatprep.subr.mxu0 0.0
  %663 = vmatpush1.msra.mxu0 0.0
  %664 = vmatprep.subr.mxu0 0.0
  %665 = vmatpush1.msra.mxu0 0.0
  %666 = vmatprep.subr.mxu0 0.0
  %667 = vmatpush1.msra.mxu0 0.0
  %668 = vmatprep.subr.mxu0 0.0
  %669 = vmatpush1.msra.mxu0 0.0
  %670 = vmatprep.subr.mxu0 0.0
  %671 = vmatpush1.msra.mxu0 0.0
  %672 = vmatprep.subr.mxu0 0.0
  %673 = vmatpush1.msra.mxu0 0.0
  %674 = vmatprep.subr.mxu0 0.0
  %675 = vmatpush1.msra.mxu0 0.0
  %676 = vmatprep.mubr.f32.mxu0 0.0
  %677 = vmatmul.mubr.f32.gmra.mrb[0].mxu0 %v610
  %v678 = vpop.f32.mrb[0].mxu0
  %v679 = vadd.f32 0.0, %v678
  %v680 = vpop.f32.mrb[0].mxu0
  %681 = vdwg.mxu0
  %v682 = vadd.f32 %v609, %v679
  %v683 = vxor.u32 %v682, 2147483648
  %v684 = vmul.f32 %v683, 1.442695
  %v685 = vpow.pop %v684
  %v686 = vadd.f32 %v685, 1.0
  %v687 = vrcp.pop %v686
  %v688 = vmul.f32 1.0, %v687
  %v689 = vtanh.pop %v682
  %v690 = vmul.f32 %v688, %v595
  %692 = vrot.lane.b32.xlu0 %v689, 64
  %v693 = vpop.permute.xlu0 %692
  %v695 = vmul.f32 %v688, %v693
  %697 = vrot.lane.b32.xlu0 %v695, 32
  %v698 = vpop.permute.xlu0 %697
  %v700 = vadd.f32 %v690, %v698
  %v701 = vtanh.pop %v700
  %703 = vrot.lane.b32.xlu0 %v701, 64
  %v704 = vpop.permute.xlu0 %703
  %v706 = vmul.f32 %v688, %v704
  %708 = vrot.lane.b32.xlu0 %v706, 32
  %v709 = vpop.permute.xlu0 %708
  %s711 = scalar_lea.vmem [#allocation2], 32
  %712 = vst.msk [vmem:[%s711] sm:$0xff] %vm47, %v709
  %s713 = scalar_lea.vmem [#allocation3], 40
  %v714 = vld [vmem:[%s713] sm:$0xff]
  %v715 = vsel %vm47, %v709, 0
  %717 = vmatprep.subr.mxu0 0.0
  %718 = vmatpush1.msra.mxu0 %v185
  %719 = vmatprep.subr.mxu0 0.0
  %720 = vmatpush1.msra.mxu0 %v186
  %721 = vmatprep.subr.mxu0 0.0
  %722 = vmatpush1.msra.mxu0 %v187
  %723 = vmatprep.subr.mxu0 0.0
  %724 = vmatpush1.msra.mxu0 %v188
  %725 = vmatprep.subr.mxu0 0.0
  %726 = vmatpush1.msra.mxu0 0.0
  %727 = vmatprep.subr.mxu0 0.0
  %728 = vmatpush1.msra.mxu0 0.0
  %729 = vmatprep.subr.mxu0 0.0
  %730 = vmatpush1.msra.mxu0 0.0
  %731 = vmatprep.subr.mxu0 0.0
  %732 = vmatpush1.msra.mxu0 0.0
  %733 = vmatprep.subr.mxu0 0.0
  %734 = vmatpush1.msra.mxu0 0.0
  %735 = vmatprep.subr.mxu0 0.0
  %736 = vmatpush1.msra.mxu0 0.0
  %737 = vmatprep.subr.mxu0 0.0
  %738 = vmatpush1.msra.mxu0 0.0
  %739 = vmatprep.subr.mxu0 0.0
  %740 = vmatpush1.msra.mxu0 0.0
  %741 = vmatprep.subr.mxu0 0.0
  %742 = vmatpush1.msra.mxu0 0.0
  %743 = vmatprep.subr.mxu0 0.0
  %744 = vmatpush1.msra.mxu0 0.0
  %745 = vmatprep.subr.mxu0 0.0
  %746 = vmatpush1.msra.mxu0 0.0
  %747 = vmatprep.subr.mxu0 0.0
  %748 = vmatpush1.msra.mxu0 0.0
  %749 = vmatprep.subr.mxu0 0.0
  %750 = vmatpush1.msra.mxu0 0.0
  %751 = vmatprep.subr.mxu0 0.0
  %752 = vmatpush1.msra.mxu0 0.0
  %753 = vmatprep.subr.mxu0 0.0
  %754 = vmatpush1.msra.mxu0 0.0
  %755 = vmatprep.subr.mxu0 0.0
  %756 = vmatpush1.msra.mxu0 0.0
  %757 = vmatprep.subr.mxu0 0.0
  %758 = vmatpush1.msra.mxu0 0.0
  %759 = vmatprep.subr.mxu0 0.0
  %760 = vmatpush1.msra.mxu0 0.0
  %761 = vmatprep.subr.mxu0 0.0
  %762 = vmatpush1.msra.mxu0 0.0
  %763 = vmatprep.subr.mxu0 0.0
  %764 = vmatpush1.msra.mxu0 0.0
  %765 = vmatprep.subr.mxu0 0.0
  %766 = vmatpush1.msra.mxu0 0.0
  %767 = vmatprep.subr.mxu0 0.0
  %768 = vmatpush1.msra.mxu0 0.0
  %769 = vmatprep.subr.mxu0 0.0
  %770 = vmatpush1.msra.mxu0 0.0
  %771 = vmatprep.subr.mxu0 0.0
  %772 = vmatpush1.msra.mxu0 0.0
  %773 = vmatprep.subr.mxu0 0.0
  %774 = vmatpush1.msra.mxu0 0.0
  %775 = vmatprep.subr.mxu0 0.0
  %776 = vmatpush1.msra.mxu0 0.0
  %777 = vmatprep.subr.mxu0 0.0
  %778 = vmatpush1.msra.mxu0 0.0
  %779 = vmatprep.subr.mxu0 0.0
  %780 = vmatpush1.msra.mxu0 0.0
  %781 = vmatprep.mubr.f32.mxu0 0.0
  %782 = vmatmul.mubr.f32.gmra.mrb[0].mxu0 %v715
  %v783 = vpop.f32.mrb[0].mxu0
  %v784 = vadd.f32 0.0, %v783
  %v785 = vpop.f32.mrb[0].mxu0
  %786 = vdwg.mxu0
  %v787 = vadd.f32 %v714, %v784
  %v788 = vxor.u32 %v787, 2147483648
  %v789 = vmul.f32 %v788, 1.442695
  %v790 = vpow.pop %v789
  %v791 = vadd.f32 %v790, 1.0
  %v792 = vrcp.pop %v791
  %v793 = vmul.f32 1.0, %v792
  %v794 = vtanh.pop %v787
  %v795 = vmul.f32 %v793, %v700
  %797 = vrot.lane.b32.xlu0 %v794, 64
  %v798 = vpop.permute.xlu0 %797
  %v800 = vmul.f32 %v793, %v798
  %802 = vrot.lane.b32.xlu0 %v800, 32
  %v803 = vpop.permute.xlu0 %802
  %v805 = vadd.f32 %v795, %v803
  %v806 = vtanh.pop %v805
  %808 = vrot.lane.b32.xlu0 %v806, 64
  %v809 = vpop.permute.xlu0 %808
  %v811 = vmul.f32 %v793, %v809
  %813 = vrot.lane.b32.xlu0 %v811, 32
  %v814 = vpop.permute.xlu0 %813
  %s816 = scalar_lea.vmem [#allocation2], 40
  %817 = vst.msk [vmem:[%s816] sm:$0xff] %vm47, %v814
  %s818 = scalar_lea.vmem [#allocation3], 48
  %v819 = vld [vmem:[%s818] sm:$0xff]
  %v820 = vsel %vm47, %v814, 0
  %822 = vmatprep.subr.mxu0 0.0
  %823 = vmatpush1.msra.mxu0 %v185
  %824 = vmatprep.subr.mxu0 0.0
  %825 = vmatpush1.msra.mxu0 %v186
  %826 = vmatprep.subr.mxu0 0.0
  %827 = vmatpush1.msra.mxu0 %v187
  %828 = vmatprep.subr.mxu0 0.0
  %829 = vmatpush1.msra.mxu0 %v188
  %830 = vmatprep.subr.mxu0 0.0
  %831 = vmatpush1.msra.mxu0 0.0
  %832 = vmatprep.subr.mxu0 0.0
  %833 = vmatpush1.msra.mxu0 0.0
  %834 = vmatprep.subr.mxu0 0.0
  %835 = vmatpush1.msra.mxu0 0.0
  %836 = vmatprep.subr.mxu0 0.0
  %837 = vmatpush1.msra.mxu0 0.0
  %838 = vmatprep.subr.mxu0 0.0
  %839 = vmatpush1.msra.mxu0 0.0
  %840 = vmatprep.subr.mxu0 0.0
  %841 = vmatpush1.msra.mxu0 0.0
  %842 = vmatprep.subr.mxu0 0.0
  %843 = vmatpush1.msra.mxu0 0.0
  %844 = vmatprep.subr.mxu0 0.0
  %845 = vmatpush1.msra.mxu0 0.0
  %846 = vmatprep.subr.mxu0 0.0
  %847 = vmatpush1.msra.mxu0 0.0
  %848 = vmatprep.subr.mxu0 0.0
  %849 = vmatpush1.msra.mxu0 0.0
  %850 = vmatprep.subr.mxu0 0.0
  %851 = vmatpush1.msra.mxu0 0.0
  %852 = vmatprep.subr.mxu0 0.0
  %853 = vmatpush1.msra.mxu0 0.0
  %854 = vmatprep.subr.mxu0 0.0
  %855 = vmatpush1.msra.mxu0 0.0
  %856 = vmatprep.subr.mxu0 0.0
  %857 = vmatpush1.msra.mxu0 0.0
  %858 = vmatprep.subr.mxu0 0.0
  %859 = vmatpush1.msra.mxu0 0.0
  %860 = vmatprep.subr.mxu0 0.0
  %861 = vmatpush1.msra.mxu0 0.0
  %862 = vmatprep.subr.mxu0 0.0
  %863 = vmatpush1.msra.mxu0 0.0
  %864 = vmatprep.subr.mxu0 0.0
  %865 = vmatpush1.msra.mxu0 0.0
  %866 = vmatprep.subr.mxu0 0.0
  %867 = vmatpush1.msra.mxu0 0.0
  %868 = vmatprep.subr.mxu0 0.0
  %869 = vmatpush1.msra.mxu0 0.0
  %870 = vmatprep.subr.mxu0 0.0
  %871 = vmatpush1.msra.mxu0 0.0
  %872 = vmatprep.subr.mxu0 0.0
  %873 = vmatpush1.msra.mxu0 0.0
  %874 = vmatprep.subr.mxu0 0.0
  %875 = vmatpush1.msra.mxu0 0.0
  %876 = vmatprep.subr.mxu0 0.0
  %877 = vmatpush1.msra.mxu0 0.0
  %878 = vmatprep.subr.mxu0 0.0
  %879 = vmatpush1.msra.mxu0 0.0
  %880 = vmatprep.subr.mxu0 0.0
  %881 = vmatpush1.msra.mxu0 0.0
  %882 = vmatprep.subr.mxu0 0.0
  %883 = vmatpush1.msra.mxu0 0.0
  %884 = vmatprep.subr.mxu0 0.0
  %885 = vmatpush1.msra.mxu0 0.0
  %886 = vmatprep.mubr.f32.mxu0 0.0
  %887 = vmatmul.mubr.f32.gmra.mrb[0].mxu0 %v820
  %v888 = vpop.f32.mrb[0].mxu0
  %v889 = vadd.f32 0.0, %v888
  %v890 = vpop.f32.mrb[0].mxu0
  %891 = vdwg.mxu0
  %v892 = vadd.f32 %v819, %v889
  %v893 = vxor.u32 %v892, 2147483648
  %v894 = vmul.f32 %v893, 1.442695
  %v895 = vpow.pop %v894
  %v896 = vadd.f32 %v895, 1.0
  %v897 = vrcp.pop %v896
  %v898 = vmul.f32 1.0, %v897
  %v899 = vtanh.pop %v892
  %v900 = vmul.f32 %v898, %v805
  %902 = vrot.lane.b32.xlu0 %v899, 64
  %v903 = vpop.permute.xlu0 %902
  %v905 = vmul.f32 %v898, %v903
  %907 = vrot.lane.b32.xlu0 %v905, 32
  %v908 = vpop.permute.xlu0 %907
  %v910 = vadd.f32 %v900, %v908
  %v911 = vtanh.pop %v910
  %913 = vrot.lane.b32.xlu0 %v911, 64
  %v914 = vpop.permute.xlu0 %913
  %v916 = vmul.f32 %v898, %v914
  %918 = vrot.lane.b32.xlu0 %v916, 32
  %v919 = vpop.permute.xlu0 %918
  %s921 = scalar_lea.vmem [#allocation2], 48
  %922 = vst.msk [vmem:[%s921] sm:$0xff] %vm47, %v919
  %s923 = scalar_lea.vmem [#allocation3], 56
  %v924 = vld [vmem:[%s923] sm:$0xff]
  %v925 = vsel %vm47, %v919, 0
  %927 = vmatprep.subr.mxu0 0.0
  %928 = vmatpush1.msra.mxu0 %v185
  %929 = vmatprep.subr.mxu0 0.0
  %930 = vmatpush1.msra.mxu0 %v186
  %931 = vmatprep.subr.mxu0 0.0
  %932 = vmatpush1.msra.mxu0 %v187
  %933 = vmatprep.subr.mxu0 0.0
  %934 = vmatpush1.msra.mxu0 %v188
  %935 = vmatprep.subr.mxu0 0.0
  %936 = vmatpush1.msra.mxu0 0.0
  %937 = vmatprep.subr.mxu0 0.0
  %938 = vmatpush1.msra.mxu0 0.0
  %939 = vmatprep.subr.mxu0 0.0
  %940 = vmatpush1.msra.mxu0 0.0
  %941 = vmatprep.subr.mxu0 0.0
  %942 = vmatpush1.msra.mxu0 0.0
  %943 = vmatprep.subr.mxu0 0.0
  %944 = vmatpush1.msra.mxu0 0.0
  %945 = vmatprep.subr.mxu0 0.0
  %946 = vmatpush1.msra.mxu0 0.0
  %947 = vmatprep.subr.mxu0 0.0
  %948 = vmatpush1.msra.mxu0 0.0
  %949 = vmatprep.subr.mxu0 0.0
  %950 = vmatpush1.msra.mxu0 0.0
  %951 = vmatprep.subr.mxu0 0.0
  %952 = vmatpush1.msra.mxu0 0.0
  %953 = vmatprep.subr.mxu0 0.0
  %954 = vmatpush1.msra.mxu0 0.0
  %955 = vmatprep.subr.mxu0 0.0
  %956 = vmatpush1.msra.mxu0 0.0
  %957 = vmatprep.subr.mxu0 0.0
  %958 = vmatpush1.msra.mxu0 0.0
  %959 = vmatprep.subr.mxu0 0.0
  %960 = vmatpush1.msra.mxu0 0.0
  %961 = vmatprep.subr.mxu0 0.0
  %962 = vmatpush1.msra.mxu0 0.0
  %963 = vmatprep.subr.mxu0 0.0
  %964 = vmatpush1.msra.mxu0 0.0
  %965 = vmatprep.subr.mxu0 0.0
  %966 = vmatpush1.msra.mxu0 0.0
  %967 = vmatprep.subr.mxu0 0.0
  %968 = vmatpush1.msra.mxu0 0.0
  %969 = vmatprep.subr.mxu0 0.0
  %970 = vmatpush1.msra.mxu0 0.0
  %971 = vmatprep.subr.mxu0 0.0
  %972 = vmatpush1.msra.mxu0 0.0
  %973 = vmatprep.subr.mxu0 0.0
  %974 = vmatpush1.msra.mxu0 0.0
  %975 = vmatprep.subr.mxu0 0.0
  %976 = vmatpush1.msra.mxu0 0.0
  %977 = vmatprep.subr.mxu0 0.0
  %978 = vmatpush1.msra.mxu0 0.0
  %979 = vmatprep.subr.mxu0 0.0
  %980 = vmatpush1.msra.mxu0 0.0
  %981 = vmatprep.subr.mxu0 0.0
  %982 = vmatpush1.msra.mxu0 0.0
  %983 = vmatprep.subr.mxu0 0.0
  %984 = vmatpush1.msra.mxu0 0.0
  %985 = vmatprep.subr.mxu0 0.0
  %986 = vmatpush1.msra.mxu0 0.0
  %987 = vmatprep.subr.mxu0 0.0
  %988 = vmatpush1.msra.mxu0 0.0
  %989 = vmatprep.subr.mxu0 0.0
  %990 = vmatpush1.msra.mxu0 0.0
  %991 = vmatprep.mubr.f32.mxu0 0.0
  %992 = vmatmul.mubr.f32.gmra.mrb[0].mxu0 %v925
  %v993 = vpop.f32.mrb[0].mxu0
  %v994 = vadd.f32 0.0, %v993
  %v995 = vpop.f32.mrb[0].mxu0
  %996 = vdwg.mxu0
  %v997 = vadd.f32 %v924, %v994
  %v998 = vxor.u32 %v997, 2147483648
  %v999 = vmul.f32 %v998, 1.442695
  %v1000 = vpow.pop %v999
  %v1001 = vadd.f32 %v1000, 1.0
  %v1002 = vrcp.pop %v1001
  %v1003 = vmul.f32 1.0, %v1002
  %v1004 = vtanh.pop %v997
  %v1005 = vmul.f32 %v1003, %v910
  %1007 = vrot.lane.b32.xlu0 %v1004, 64
  %v1008 = vpop.permute.xlu0 %1007
  %v1010 = vmul.f32 %v1003, %v1008
  %1012 = vrot.lane.b32.xlu0 %v1010, 32
  %v1013 = vpop.permute.xlu0 %1012
  %v1015 = vadd.f32 %v1005, %v1013
  %v1016 = vtanh.pop %v1015
  %1018 = vrot.lane.b32.xlu0 %v1016, 64
  %v1019 = vpop.permute.xlu0 %1018
  %v1021 = vmul.f32 %v1003, %v1019
  %1023 = vrot.lane.b32.xlu0 %v1021, 32
  %v1024 = vpop.permute.xlu0 %1023
  %s1026 = scalar_lea.vmem [#allocation2], 56
  %1027 = vst.msk [vmem:[%s1026] sm:$0xff] %vm47, %v1024
  %1028 = vst.msk [vmem:[%s7] sm:$0xff] %vm47, %v1024
  %1030 = vrot.lane.b32.xlu0 %v1015, 96
  %v1031 = vpop.permute.xlu0 %1030
  %1033 = vst.msk [vmem:[%s8] sm:$0xff] %vm47, %v1031
  %v1034 = vld [vmem:[#allocation2] sm:$0xff]
  %v1035 = vld [vmem:[#allocation2 + $0x8] sm:$0xff]
  %v1036 = vld [vmem:[#allocation2 + $0x10] sm:$0xff]
  %v1037 = vld [vmem:[#allocation2 + $0x18] sm:$0xff]
  %v1038 = vld [vmem:[#allocation2 + $0x20] sm:$0xff]
  %v1039 = vld [vmem:[#allocation2 + $0x28] sm:$0xff]
  %v1040 = vld [vmem:[#allocation2 + $0x30] sm:$0xff]
  %v1041 = vld [vmem:[#allocation2 + $0x38] sm:$0xff]
  %v1042 = vld [vmem:[%s4] sm:$0xff]
  %v1043 = vld [vmem:[%s4 + $0x8] sm:$0xff]
  %v1044 = vld [vmem:[%s4 + $0x10] sm:$0xff]
  %v1045 = vld [vmem:[%s4 + $0x18] sm:$0xff]
  %v1046 = vld [vmem:[%s6] sm:$0x1]
  %v1048 = vlaneseq
  %v1049 = vshrl.u32 %v1048, 7
  %v1050 = vsub.s32 0, %v1049
  %v1051 = vrot.slane %v1046, %v1050
  %v1054 = vsel %vm47, %v1034, 0
  %v1057 = vsel %vm47, %v1035, 0
  %v1060 = vsel %vm47, %v1036, 0
  %v1063 = vsel %vm47, %v1037, 0
  %v1066 = vsel %vm47, %v1038, 0
  %v1069 = vsel %vm47, %v1039, 0
  %v1072 = vsel %vm47, %v1040, 0
  %v1075 = vsel %vm47, %v1041, 0
  %1077 = vmatprep.subr.mxu0 0.0
  %1078 = vmatpush1.msra.mxu0 %v1042
  %1079 = vmatprep.subr.mxu0 0.0
  %1080 = vmatpush1.msra.mxu0 %v1043
  %1081 = vmatprep.subr.mxu0 0.0
  %1082 = vmatpush1.msra.mxu0 %v1044
  %1083 = vmatprep.subr.mxu0 0.0
  %1084 = vmatpush1.msra.mxu0 %v1045
  %1085 = vmatprep.subr.mxu0 0.0
  %1086 = vmatpush1.msra.mxu0 0.0
  %1087 = vmatprep.subr.mxu0 0.0
  %1088 = vmatpush1.msra.mxu0 0.0
  %1089 = vmatprep.subr.mxu0 0.0
  %1090 = vmatpush1.msra.mxu0 0.0
  %1091 = vmatprep.subr.mxu0 0.0
  %1092 = vmatpush1.msra.mxu0 0.0
  %1093 = vmatprep.subr.mxu0 0.0
  %1094 = vmatpush1.msra.mxu0 0.0
  %1095 = vmatprep.subr.mxu0 0.0
  %1096 = vmatpush1.msra.mxu0 0.0
  %1097 = vmatprep.subr.mxu0 0.0
  %1098 = vmatpush1.msra.mxu0 0.0
  %1099 = vmatprep.subr.mxu0 0.0
  %1100 = vmatpush1.msra.mxu0 0.0
  %1101 = vmatprep.subr.mxu0 0.0
  %1102 = vmatpush1.msra.mxu0 0.0
  %1103 = vmatprep.subr.mxu0 0.0
  %1104 = vmatpush1.msra.mxu0 0.0
  %1105 = vmatprep.subr.mxu0 0.0
  %1106 = vmatpush1.msra.mxu0 0.0
  %1107 = vmatprep.subr.mxu0 0.0
  %1108 = vmatpush1.msra.mxu0 0.0
  %1109 = vmatprep.subr.mxu0 0.0
  %1110 = vmatpush1.msra.mxu0 0.0
  %1111 = vmatprep.subr.mxu0 0.0
  %1112 = vmatpush1.msra.mxu0 0.0
  %1113 = vmatprep.subr.mxu0 0.0
  %1114 = vmatpush1.msra.mxu0 0.0
  %1115 = vmatprep.subr.mxu0 0.0
  %1116 = vmatpush1.msra.mxu0 0.0
  %1117 = vmatprep.subr.mxu0 0.0
  %1118 = vmatpush1.msra.mxu0 0.0
  %1119 = vmatprep.subr.mxu0 0.0
  %1120 = vmatpush1.msra.mxu0 0.0
  %1121 = vmatprep.subr.mxu0 0.0
  %1122 = vmatpush1.msra.mxu0 0.0
  %1123 = vmatprep.subr.mxu0 0.0
  %1124 = vmatpush1.msra.mxu0 0.0
  %1125 = vmatprep.subr.mxu0 0.0
  %1126 = vmatpush1.msra.mxu0 0.0
  %1127 = vmatprep.subr.mxu0 0.0
  %1128 = vmatpush1.msra.mxu0 0.0
  %1129 = vmatprep.subr.mxu0 0.0
  %1130 = vmatpush1.msra.mxu0 0.0
  %1131 = vmatprep.subr.mxu0 0.0
  %1132 = vmatpush1.msra.mxu0 0.0
  %1133 = vmatprep.subr.mxu0 0.0
  %1134 = vmatpush1.msra.mxu0 0.0
  %1135 = vmatprep.subr.mxu0 0.0
  %1136 = vmatpush1.msra.mxu0 0.0
  %1137 = vmatprep.subr.mxu0 0.0
  %1138 = vmatpush1.msra.mxu0 0.0
  %1139 = vmatprep.subr.mxu0 0.0
  %1140 = vmatpush1.msra.mxu0 0.0
  %1141 = vmatprep.mubr.f32.mxu0 0.0
  %1142 = vmatmul.mubr.f32.gmra.mrb[0].mxu0 %v1054
  %v1143 = vpop.f32.mrb[0].mxu0
  %v1144 = vadd.f32 %v1051, %v1143
  %v1145 = vpop.f32.mrb[0].mxu0
  %1146 = vmatprep.mubr.f32.mxu0 0.0
  %1147 = vmatmul.mubr.f32.gmra.mrb[0].mxu0 %v1057
  %v1148 = vpop.f32.mrb[0].mxu0
  %v1149 = vadd.f32 %v1051, %v1148
  %v1150 = vpop.f32.mrb[0].mxu0
  %1151 = vmatprep.mubr.f32.mxu0 0.0
  %1152 = vmatmul.mubr.f32.gmra.mrb[0].mxu0 %v1060
  %v1153 = vpop.f32.mrb[0].mxu0
  %v1154 = vadd.f32 %v1051, %v1153
  %v1155 = vpop.f32.mrb[0].mxu0
  %1156 = vmatprep.mubr.f32.mxu0 0.0
  %1157 = vmatmul.mubr.f32.gmra.mrb[0].mxu0 %v1063
  %v1158 = vpop.f32.mrb[0].mxu0
  %v1159 = vadd.f32 %v1051, %v1158
  %v1160 = vpop.f32.mrb[0].mxu0
  %1161 = vmatprep.mubr.f32.mxu0 0.0
  %1162 = vmatmul.mubr.f32.gmra.mrb[0].mxu0 %v1066
  %v1163 = vpop.f32.mrb[0].mxu0
  %v1164 = vadd.f32 %v1051, %v1163
  %v1165 = vpop.f32.mrb[0].mxu0
  %1166 = vmatprep.mubr.f32.mxu0 0.0
  %1167 = vmatmul.mubr.f32.gmra.mrb[0].mxu0 %v1069
  %v1168 = vpop.f32.mrb[0].mxu0
  %v1169 = vadd.f32 %v1051, %v1168
  %v1170 = vpop.f32.mrb[0].mxu0
  %1171 = vmatprep.mubr.f32.mxu0 0.0
  %1172 = vmatmul.mubr.f32.gmra.mrb[0].mxu0 %v1072
  %v1173 = vpop.f32.mrb[0].mxu0
  %v1174 = vadd.f32 %v1051, %v1173
  %v1175 = vpop.f32.mrb[0].mxu0
  %1176 = vmatprep.mubr.f32.mxu0 0.0
  %1177 = vmatmul.mubr.f32.gmra.mrb[0].mxu0 %v1075
  %v1178 = vpop.f32.mrb[0].mxu0
  %v1179 = vadd.f32 %v1051, %v1178
  %v1180 = vpop.f32.mrb[0].mxu0
  %1181 = vdwg.mxu0
  %1182 = vst [vmem:[#allocation3] sm:$0xff] %v1144
  %1183 = vst [vmem:[#allocation3 + $0x8] sm:$0xff] %v1149
  %1184 = vst [vmem:[#allocation3 + $0x10] sm:$0xff] %v1154
  %1185 = vst [vmem:[#allocation3 + $0x18] sm:$0xff] %v1159
  %1186 = vst [vmem:[#allocation3 + $0x20] sm:$0xff] %v1164
  %1187 = vst [vmem:[#allocation3 + $0x28] sm:$0xff] %v1169
  %1188 = vst [vmem:[#allocation3 + $0x30] sm:$0xff] %v1174
  %1189 = vst [vmem:[#allocation3 + $0x38] sm:$0xff] %v1179
  %v1190 = vld [vmem:[%s5] sm:$0xff]
  %v1191 = vld [vmem:[%s5 + $0x8] sm:$0xff]
  %v1192 = vld [vmem:[%s5 + $0x10] sm:$0xff]
  %v1193 = vld [vmem:[%s5 + $0x18] sm:$0xff]
  %v1194 = vld [vmem:[#allocation3] sm:$0xff]
  %1195 = vmatprep.subr.mxu0 0.0
  %1196 = vmatpush1.msra.mxu0 %v1190
  %1197 = vmatprep.subr.mxu0 0.0
  %1198 = vmatpush1.msra.mxu0 %v1191
  %1199 = vmatprep.subr.mxu0 0.0
  %1200 = vmatpush1.msra.mxu0 %v1192
  %1201 = vmatprep.subr.mxu0 0.0
  %1202 = vmatpush1.msra.mxu0 %v1193
  %1203 = vmatprep.subr.mxu0 0.0
  %1204 = vmatpush1.msra.mxu0 0.0
  %1205 = vmatprep.subr.mxu0 0.0
  %1206 = vmatpush1.msra.mxu0 0.0
  %1207 = vmatprep.subr.mxu0 0.0
  %1208 = vmatpush1.msra.mxu0 0.0
  %1209 = vmatprep.subr.mxu0 0.0
  %1210 = vmatpush1.msra.mxu0 0.0
  %1211 = vmatprep.subr.mxu0 0.0
  %1212 = vmatpush1.msra.mxu0 0.0
  %1213 = vmatprep.subr.mxu0 0.0
  %1214 = vmatpush1.msra.mxu0 0.0
  %1215 = vmatprep.subr.mxu0 0.0
  %1216 = vmatpush1.msra.mxu0 0.0
  %1217 = vmatprep.subr.mxu0 0.0
  %1218 = vmatpush1.msra.mxu0 0.0
  %1219 = vmatprep.subr.mxu0 0.0
  %1220 = vmatpush1.msra.mxu0 0.0
  %1221 = vmatprep.subr.mxu0 0.0
  %1222 = vmatpush1.msra.mxu0 0.0
  %1223 = vmatprep.subr.mxu0 0.0
  %1224 = vmatpush1.msra.mxu0 0.0
  %1225 = vmatprep.subr.mxu0 0.0
  %1226 = vmatpush1.msra.mxu0 0.0
  %1227 = vmatprep.subr.mxu0 0.0
  %1228 = vmatpush1.msra.mxu0 0.0
  %1229 = vmatprep.subr.mxu0 0.0
  %1230 = vmatpush1.msra.mxu0 0.0
  %1231 = vmatprep.subr.mxu0 0.0
  %1232 = vmatpush1.msra.mxu0 0.0
  %1233 = vmatprep.subr.mxu0 0.0
  %1234 = vmatpush1.msra.mxu0 0.0
  %1235 = vmatprep.subr.mxu0 0.0
  %1236 = vmatpush1.msra.mxu0 0.0
  %1237 = vmatprep.subr.mxu0 0.0
  %1238 = vmatpush1.msra.mxu0 0.0
  %1239 = vmatprep.subr.mxu0 0.0
  %1240 = vmatpush1.msra.mxu0 0.0
  %1241 = vmatprep.subr.mxu0 0.0
  %1242 = vmatpush1.msra.mxu0 0.0
  %1243 = vmatprep.subr.mxu0 0.0
  %1244 = vmatpush1.msra.mxu0 0.0
  %1245 = vmatprep.subr.mxu0 0.0
  %1246 = vmatpush1.msra.mxu0 0.0
  %1247 = vmatprep.subr.mxu0 0.0
  %1248 = vmatpush1.msra.mxu0 0.0
  %1249 = vmatprep.subr.mxu0 0.0
  %1250 = vmatpush1.msra.mxu0 0.0
  %1251 = vmatprep.subr.mxu0 0.0
  %1252 = vmatpush1.msra.mxu0 0.0
  %1253 = vmatprep.subr.mxu0 0.0
  %1254 = vmatpush1.msra.mxu0 0.0
  %1255 = vmatprep.subr.mxu0 0.0
  %1256 = vmatpush1.msra.mxu0 0.0
  %1257 = vmatprep.subr.mxu0 0.0
  %1258 = vmatpush1.msra.mxu0 0.0
  %1259 = vmatprep.mubr.f32.mxu0 0.0
  %1260 = vmatmul.mubr.f32.gmra.mrb[0].mxu0 %v191
  %v1261 = vpop.f32.mrb[0].mxu0
  %v1262 = vadd.f32 0.0, %v1261
  %v1263 = vpop.f32.mrb[0].mxu0
  %1264 = vdwg.mxu0
  %v1265 = vadd.f32 %v1194, %v1262
  %v1266 = vxor.u32 %v1265, 2147483648
  %v1267 = vmul.f32 %v1266, 1.442695
  %v1268 = vpow.pop %v1267
  %v1269 = vadd.f32 %v1268, 1.0
  %v1270 = vrcp.pop %v1269
  %v1271 = vmul.f32 1.0, %v1270
  %v1272 = vtanh.pop %v1265
  %v1273 = vmul.f32 %v1271, 0.0
  %1275 = vrot.lane.b32.xlu0 %v1272, 64
  %v1276 = vpop.permute.xlu0 %1275
  %v1278 = vmul.f32 %v1271, %v1276
  %1280 = vrot.lane.b32.xlu0 %v1278, 32
  %v1281 = vpop.permute.xlu0 %1280
  %v1283 = vadd.f32 %v1273, %v1281
  %v1284 = vtanh.pop %v1283
  %1286 = vrot.lane.b32.xlu0 %v1284, 64
  %v1287 = vpop.permute.xlu0 %1286
  %v1289 = vmul.f32 %v1271, %v1287
  %v1290 = vld [vmem:[%s293] sm:$0xff]
  %1292 = vrot.lane.b32.xlu0 %v1289, 32
  %v1293 = vpop.permute.xlu0 %1292
  %v1294 = vsel %vm47, %v1293, 0
  %1296 = vmatprep.subr.mxu0 0.0
  %1297 = vmatpush1.msra.mxu0 %v1190
  %1298 = vmatprep.subr.mxu0 0.0
  %1299 = vmatpush1.msra.mxu0 %v1191
  %1300 = vmatprep.subr.mxu0 0.0
  %1301 = vmatpush1.msra.mxu0 %v1192
  %1302 = vmatprep.subr.mxu0 0.0
  %1303 = vmatpush1.msra.mxu0 %v1193
  %1304 = vmatprep.subr.mxu0 0.0
  %1305 = vmatpush1.msra.mxu0 0.0
  %1306 = vmatprep.subr.mxu0 0.0
  %1307 = vmatpush1.msra.mxu0 0.0
  %1308 = vmatprep.subr.mxu0 0.0
  %1309 = vmatpush1.msra.mxu0 0.0
  %1310 = vmatprep.subr.mxu0 0.0
  %1311 = vmatpush1.msra.mxu0 0.0
  %1312 = vmatprep.subr.mxu0 0.0
  %1313 = vmatpush1.msra.mxu0 0.0
  %1314 = vmatprep.subr.mxu0 0.0
  %1315 = vmatpush1.msra.mxu0 0.0
  %1316 = vmatprep.subr.mxu0 0.0
  %1317 = vmatpush1.msra.mxu0 0.0
  %1318 = vmatprep.subr.mxu0 0.0
  %1319 = vmatpush1.msra.mxu0 0.0
  %1320 = vmatprep.subr.mxu0 0.0
  %1321 = vmatpush1.msra.mxu0 0.0
  %1322 = vmatprep.subr.mxu0 0.0
  %1323 = vmatpush1.msra.mxu0 0.0
  %1324 = vmatprep.subr.mxu0 0.0
  %1325 = vmatpush1.msra.mxu0 0.0
  %1326 = vmatprep.subr.mxu0 0.0
  %1327 = vmatpush1.msra.mxu0 0.0
  %1328 = vmatprep.subr.mxu0 0.0
  %1329 = vmatpush1.msra.mxu0 0.0
  %1330 = vmatprep.subr.mxu0 0.0
  %1331 = vmatpush1.msra.mxu0 0.0
  %1332 = vmatprep.subr.mxu0 0.0
  %1333 = vmatpush1.msra.mxu0 0.0
  %1334 = vmatprep.subr.mxu0 0.0
  %1335 = vmatpush1.msra.mxu0 0.0
  %1336 = vmatprep.subr.mxu0 0.0
  %1337 = vmatpush1.msra.mxu0 0.0
  %1338 = vmatprep.subr.mxu0 0.0
  %1339 = vmatpush1.msra.mxu0 0.0
  %1340 = vmatprep.subr.mxu0 0.0
  %1341 = vmatpush1.msra.mxu0 0.0
  %1342 = vmatprep.subr.mxu0 0.0
  %1343 = vmatpush1.msra.mxu0 0.0
  %1344 = vmatprep.subr.mxu0 0.0
  %1345 = vmatpush1.msra.mxu0 0.0
  %1346 = vmatprep.subr.mxu0 0.0
  %1347 = vmatpush1.msra.mxu0 0.0
  %1348 = vmatprep.subr.mxu0 0.0
  %1349 = vmatpush1.msra.mxu0 0.0
  %1350 = vmatprep.subr.mxu0 0.0
  %1351 = vmatpush1.msra.mxu0 0.0
  %1352 = vmatprep.subr.mxu0 0.0
  %1353 = vmatpush1.msra.mxu0 0.0
  %1354 = vmatprep.subr.mxu0 0.0
  %1355 = vmatpush1.msra.mxu0 0.0
  %1356 = vmatprep.subr.mxu0 0.0
  %1357 = vmatpush1.msra.mxu0 0.0
  %1358 = vmatprep.subr.mxu0 0.0
  %1359 = vmatpush1.msra.mxu0 0.0
  %1360 = vmatprep.mubr.f32.mxu0 0.0
  %1361 = vmatmul.mubr.f32.gmra.mrb[0].mxu0 %v1294
  %v1362 = vpop.f32.mrb[0].mxu0
  %v1363 = vadd.f32 0.0, %v1362
  %v1364 = vpop.f32.mrb[0].mxu0
  %1365 = vdwg.mxu0
  %v1366 = vadd.f32 %v1290, %v1363
  %v1367 = vxor.u32 %v1366, 2147483648
  %v1368 = vmul.f32 %v1367, 1.442695
  %v1369 = vpow.pop %v1368
  %v1370 = vadd.f32 %v1369, 1.0
  %v1371 = vrcp.pop %v1370
  %v1372 = vmul.f32 1.0, %v1371
  %v1373 = vtanh.pop %v1366
  %v1374 = vmul.f32 %v1372, %v1283
  %1376 = vrot.lane.b32.xlu0 %v1373, 64
  %v1377 = vpop.permute.xlu0 %1376
  %v1379 = vmul.f32 %v1372, %v1377
  %1381 = vrot.lane.b32.xlu0 %v1379, 32
  %v1382 = vpop.permute.xlu0 %1381
  %v1384 = vadd.f32 %v1374, %v1382
  %v1385 = vtanh.pop %v1384
  %1387 = vrot.lane.b32.xlu0 %v1385, 64
  %v1388 = vpop.permute.xlu0 %1387
  %v1390 = vmul.f32 %v1372, %v1388
  %v1391 = vld [vmem:[%s398] sm:$0xff]
  %1393 = vrot.lane.b32.xlu0 %v1390, 32
  %v1394 = vpop.permute.xlu0 %1393
  %v1395 = vsel %vm47, %v1394, 0
  %1397 = vmatprep.subr.mxu0 0.0
  %1398 = vmatpush1.msra.mxu0 %v1190
  %1399 = vmatprep.subr.mxu0 0.0
  %1400 = vmatpush1.msra.mxu0 %v1191
  %1401 = vmatprep.subr.mxu0 0.0
  %1402 = vmatpush1.msra.mxu0 %v1192
  %1403 = vmatprep.subr.mxu0 0.0
  %1404 = vmatpush1.msra.mxu0 %v1193
  %1405 = vmatprep.subr.mxu0 0.0
  %1406 = vmatpush1.msra.mxu0 0.0
  %1407 = vmatprep.subr.mxu0 0.0
  %1408 = vmatpush1.msra.mxu0 0.0
  %1409 = vmatprep.subr.mxu0 0.0
  %1410 = vmatpush1.msra.mxu0 0.0
  %1411 = vmatprep.subr.mxu0 0.0
  %1412 = vmatpush1.msra.mxu0 0.0
  %1413 = vmatprep.subr.mxu0 0.0
  %1414 = vmatpush1.msra.mxu0 0.0
  %1415 = vmatprep.subr.mxu0 0.0
  %1416 = vmatpush1.msra.mxu0 0.0
  %1417 = vmatprep.subr.mxu0 0.0
  %1418 = vmatpush1.msra.mxu0 0.0
  %1419 = vmatprep.subr.mxu0 0.0
  %1420 = vmatpush1.msra.mxu0 0.0
  %1421 = vmatprep.subr.mxu0 0.0
  %1422 = vmatpush1.msra.mxu0 0.0
  %1423 = vmatprep.subr.mxu0 0.0
  %1424 = vmatpush1.msra.mxu0 0.0
  %1425 = vmatprep.subr.mxu0 0.0
  %1426 = vmatpush1.msra.mxu0 0.0
  %1427 = vmatprep.subr.mxu0 0.0
  %1428 = vmatpush1.msra.mxu0 0.0
  %1429 = vmatprep.subr.mxu0 0.0
  %1430 = vmatpush1.msra.mxu0 0.0
  %1431 = vmatprep.subr.mxu0 0.0
  %1432 = vmatpush1.msra.mxu0 0.0
  %1433 = vmatprep.subr.mxu0 0.0
  %1434 = vmatpush1.msra.mxu0 0.0
  %1435 = vmatprep.subr.mxu0 0.0
  %1436 = vmatpush1.msra.mxu0 0.0
  %1437 = vmatprep.subr.mxu0 0.0
  %1438 = vmatpush1.msra.mxu0 0.0
  %1439 = vmatprep.subr.mxu0 0.0
  %1440 = vmatpush1.msra.mxu0 0.0
  %1441 = vmatprep.subr.mxu0 0.0
  %1442 = vmatpush1.msra.mxu0 0.0
  %1443 = vmatprep.subr.mxu0 0.0
  %1444 = vmatpush1.msra.mxu0 0.0
  %1445 = vmatprep.subr.mxu0 0.0
  %1446 = vmatpush1.msra.mxu0 0.0
  %1447 = vmatprep.subr.mxu0 0.0
  %1448 = vmatpush1.msra.mxu0 0.0
  %1449 = vmatprep.subr.mxu0 0.0
  %1450 = vmatpush1.msra.mxu0 0.0
  %1451 = vmatprep.subr.mxu0 0.0
  %1452 = vmatpush1.msra.mxu0 0.0
  %1453 = vmatprep.subr.mxu0 0.0
  %1454 = vmatpush1.msra.mxu0 0.0
  %1455 = vmatprep.subr.mxu0 0.0
  %1456 = vmatpush1.msra.mxu0 0.0
  %1457 = vmatprep.subr.mxu0 0.0
  %1458 = vmatpush1.msra.mxu0 0.0
  %1459 = vmatprep.subr.mxu0 0.0
  %1460 = vmatpush1.msra.mxu0 0.0
  %1461 = vmatprep.mubr.f32.mxu0 0.0
  %1462 = vmatmul.mubr.f32.gmra.mrb[0].mxu0 %v1395
  %v1463 = vpop.f32.mrb[0].mxu0
  %v1464 = vadd.f32 0.0, %v1463
  %v1465 = vpop.f32.mrb[0].mxu0
  %1466 = vdwg.mxu0
  %v1467 = vadd.f32 %v1391, %v1464
  %v1468 = vxor.u32 %v1467, 2147483648
  %v1469 = vmul.f32 %v1468, 1.442695
  %v1470 = vpow.pop %v1469
  %v1471 = vadd.f32 %v1470, 1.0
  %v1472 = vrcp.pop %v1471
  %v1473 = vmul.f32 1.0, %v1472
  %v1474 = vtanh.pop %v1467
  %v1475 = vmul.f32 %v1473, %v1384
  %1477 = vrot.lane.b32.xlu0 %v1474, 64
  %v1478 = vpop.permute.xlu0 %1477
  %v1480 = vmul.f32 %v1473, %v1478
  %1482 = vrot.lane.b32.xlu0 %v1480, 32
  %v1483 = vpop.permute.xlu0 %1482
  %v1485 = vadd.f32 %v1475, %v1483
  %v1486 = vtanh.pop %v1485
  %1488 = vrot.lane.b32.xlu0 %v1486, 64
  %v1489 = vpop.permute.xlu0 %1488
  %v1491 = vmul.f32 %v1473, %v1489
  %v1492 = vld [vmem:[%s503] sm:$0xff]
  %1494 = vrot.lane.b32.xlu0 %v1491, 32
  %v1495 = vpop.permute.xlu0 %1494
  %v1496 = vsel %vm47, %v1495, 0
  %1498 = vmatprep.subr.mxu0 0.0
  %1499 = vmatpush1.msra.mxu0 %v1190
  %1500 = vmatprep.subr.mxu0 0.0
  %1501 = vmatpush1.msra.mxu0 %v1191
  %1502 = vmatprep.subr.mxu0 0.0
  %1503 = vmatpush1.msra.mxu0 %v1192
  %1504 = vmatprep.subr.mxu0 0.0
  %1505 = vmatpush1.msra.mxu0 %v1193
  %1506 = vmatprep.subr.mxu0 0.0
  %1507 = vmatpush1.msra.mxu0 0.0
  %1508 = vmatprep.subr.mxu0 0.0
  %1509 = vmatpush1.msra.mxu0 0.0
  %1510 = vmatprep.subr.mxu0 0.0
  %1511 = vmatpush1.msra.mxu0 0.0
  %1512 = vmatprep.subr.mxu0 0.0
  %1513 = vmatpush1.msra.mxu0 0.0
  %1514 = vmatprep.subr.mxu0 0.0
  %1515 = vmatpush1.msra.mxu0 0.0
  %1516 = vmatprep.subr.mxu0 0.0
  %1517 = vmatpush1.msra.mxu0 0.0
  %1518 = vmatprep.subr.mxu0 0.0
  %1519 = vmatpush1.msra.mxu0 0.0
  %1520 = vmatprep.subr.mxu0 0.0
  %1521 = vmatpush1.msra.mxu0 0.0
  %1522 = vmatprep.subr.mxu0 0.0
  %1523 = vmatpush1.msra.mxu0 0.0
  %1524 = vmatprep.subr.mxu0 0.0
  %1525 = vmatpush1.msra.mxu0 0.0
  %1526 = vmatprep.subr.mxu0 0.0
  %1527 = vmatpush1.msra.mxu0 0.0
  %1528 = vmatprep.subr.mxu0 0.0
  %1529 = vmatpush1.msra.mxu0 0.0
  %1530 = vmatprep.subr.mxu0 0.0
  %1531 = vmatpush1.msra.mxu0 0.0
  %1532 = vmatprep.subr.mxu0 0.0
  %1533 = vmatpush1.msra.mxu0 0.0
  %1534 = vmatprep.subr.mxu0 0.0
  %1535 = vmatpush1.msra.mxu0 0.0
  %1536 = vmatprep.subr.mxu0 0.0
  %1537 = vmatpush1.msra.mxu0 0.0
  %1538 = vmatprep.subr.mxu0 0.0
  %1539 = vmatpush1.msra.mxu0 0.0
  %1540 = vmatprep.subr.mxu0 0.0
  %1541 = vmatpush1.msra.mxu0 0.0
  %1542 = vmatprep.subr.mxu0 0.0
  %1543 = vmatpush1.msra.mxu0 0.0
  %1544 = vmatprep.subr.mxu0 0.0
  %1545 = vmatpush1.msra.mxu0 0.0
  %1546 = vmatprep.subr.mxu0 0.0
  %1547 = vmatpush1.msra.mxu0 0.0
  %1548 = vmatprep.subr.mxu0 0.0
  %1549 = vmatpush1.msra.mxu0 0.0
  %1550 = vmatprep.subr.mxu0 0.0
  %1551 = vmatpush1.msra.mxu0 0.0
  %1552 = vmatprep.subr.mxu0 0.0
  %1553 = vmatpush1.msra.mxu0 0.0
  %1554 = vmatprep.subr.mxu0 0.0
  %1555 = vmatpush1.msra.mxu0 0.0
  %1556 = vmatprep.subr.mxu0 0.0
  %1557 = vmatpush1.msra.mxu0 0.0
  %1558 = vmatprep.subr.mxu0 0.0
  %1559 = vmatpush1.msra.mxu0 0.0
  %1560 = vmatprep.subr.mxu0 0.0
  %1561 = vmatpush1.msra.mxu0 0.0
  %1562 = vmatprep.mubr.f32.mxu0 0.0
  %1563 = vmatmul.mubr.f32.gmra.mrb[0].mxu0 %v1496
  %v1564 = vpop.f32.mrb[0].mxu0
  %v1565 = vadd.f32 0.0, %v1564
  %v1566 = vpop.f32.mrb[0].mxu0
  %1567 = vdwg.mxu0
  %v1568 = vadd.f32 %v1492, %v1565
  %v1569 = vxor.u32 %v1568, 2147483648
  %v1570 = vmul.f32 %v1569, 1.442695
  %v1571 = vpow.pop %v1570
  %v1572 = vadd.f32 %v1571, 1.0
  %v1573 = vrcp.pop %v1572
  %v1574 = vmul.f32 1.0, %v1573
  %v1575 = vtanh.pop %v1568
  %v1576 = vmul.f32 %v1574, %v1485
  %1578 = vrot.lane.b32.xlu0 %v1575, 64
  %v1579 = vpop.permute.xlu0 %1578
  %v1581 = vmul.f32 %v1574, %v1579
  %1583 = vrot.lane.b32.xlu0 %v1581, 32
  %v1584 = vpop.permute.xlu0 %1583
  %v1586 = vadd.f32 %v1576, %v1584
  %v1587 = vtanh.pop %v1586
  %1589 = vrot.lane.b32.xlu0 %v1587, 64
  %v1590 = vpop.permute.xlu0 %1589
  %v1592 = vmul.f32 %v1574, %v1590
  %v1593 = vld [vmem:[%s608] sm:$0xff]
  %1595 = vrot.lane.b32.xlu0 %v1592, 32
  %v1596 = vpop.permute.xlu0 %1595
  %v1597 = vsel %vm47, %v1596, 0
  %1599 = vmatprep.subr.mxu0 0.0
  %1600 = vmatpush1.msra.mxu0 %v1190
  %1601 = vmatprep.subr.mxu0 0.0
  %1602 = vmatpush1.msra.mxu0 %v1191
  %1603 = vmatprep.subr.mxu0 0.0
  %1604 = vmatpush1.msra.mxu0 %v1192
  %1605 = vmatprep.subr.mxu0 0.0
  %1606 = vmatpush1.msra.mxu0 %v1193
  %1607 = vmatprep.subr.mxu0 0.0
  %1608 = vmatpush1.msra.mxu0 0.0
  %1609 = vmatprep.subr.mxu0 0.0
  %1610 = vmatpush1.msra.mxu0 0.0
  %1611 = vmatprep.subr.mxu0 0.0
  %1612 = vmatpush1.msra.mxu0 0.0
  %1613 = vmatprep.subr.mxu0 0.0
  %1614 = vmatpush1.msra.mxu0 0.0
  %1615 = vmatprep.subr.mxu0 0.0
  %1616 = vmatpush1.msra.mxu0 0.0
  %1617 = vmatprep.subr.mxu0 0.0
  %1618 = vmatpush1.msra.mxu0 0.0
  %1619 = vmatprep.subr.mxu0 0.0
  %1620 = vmatpush1.msra.mxu0 0.0
  %1621 = vmatprep.subr.mxu0 0.0
  %1622 = vmatpush1.msra.mxu0 0.0
  %1623 = vmatprep.subr.mxu0 0.0
  %1624 = vmatpush1.msra.mxu0 0.0
  %1625 = vmatprep.subr.mxu0 0.0
  %1626 = vmatpush1.msra.mxu0 0.0
  %1627 = vmatprep.subr.mxu0 0.0
  %1628 = vmatpush1.msra.mxu0 0.0
  %1629 = vmatprep.subr.mxu0 0.0
  %1630 = vmatpush1.msra.mxu0 0.0
  %1631 = vmatprep.subr.mxu0 0.0
  %1632 = vmatpush1.msra.mxu0 0.0
  %1633 = vmatprep.subr.mxu0 0.0
  %1634 = vmatpush1.msra.mxu0 0.0
  %1635 = vmatprep.subr.mxu0 0.0
  %1636 = vmatpush1.msra.mxu0 0.0
  %1637 = vmatprep.subr.mxu0 0.0
  %1638 = vmatpush1.msra.mxu0 0.0
  %1639 = vmatprep.subr.mxu0 0.0
  %1640 = vmatpush1.msra.mxu0 0.0
  %1641 = vmatprep.subr.mxu0 0.0
  %1642 = vmatpush1.msra.mxu0 0.0
  %1643 = vmatprep.subr.mxu0 0.0
  %1644 = vmatpush1.msra.mxu0 0.0
  %1645 = vmatprep.subr.mxu0 0.0
  %1646 = vmatpush1.msra.mxu0 0.0
  %1647 = vmatprep.subr.mxu0 0.0
  %1648 = vmatpush1.msra.mxu0 0.0
  %1649 = vmatprep.subr.mxu0 0.0
  %1650 = vmatpush1.msra.mxu0 0.0
  %1651 = vmatprep.subr.mxu0 0.0
  %1652 = vmatpush1.msra.mxu0 0.0
  %1653 = vmatprep.subr.mxu0 0.0
  %1654 = vmatpush1.msra.mxu0 0.0
  %1655 = vmatprep.subr.mxu0 0.0
  %1656 = vmatpush1.msra.mxu0 0.0
  %1657 = vmatprep.subr.mxu0 0.0
  %1658 = vmatpush1.msra.mxu0 0.0
  %1659 = vmatprep.subr.mxu0 0.0
  %1660 = vmatpush1.msra.mxu0 0.0
  %1661 = vmatprep.subr.mxu0 0.0
  %1662 = vmatpush1.msra.mxu0 0.0
  %1663 = vmatprep.mubr.f32.mxu0 0.0
  %1664 = vmatmul.mubr.f32.gmra.mrb[0].mxu0 %v1597
  %v1665 = vpop.f32.mrb[0].mxu0
  %v1666 = vadd.f32 0.0, %v1665
  %v1667 = vpop.f32.mrb[0].mxu0
  %1668 = vdwg.mxu0
  %v1669 = vadd.f32 %v1593, %v1666
  %v1670 = vxor.u32 %v1669, 2147483648
  %v1671 = vmul.f32 %v1670, 1.442695
  %v1672 = vpow.pop %v1671
  %v1673 = vadd.f32 %v1672, 1.0
  %v1674 = vrcp.pop %v1673
  %v1675 = vmul.f32 1.0, %v1674
  %v1676 = vtanh.pop %v1669
  %v1677 = vmul.f32 %v1675, %v1586
  %1679 = vrot.lane.b32.xlu0 %v1676, 64
  %v1680 = vpop.permute.xlu0 %1679
  %v1682 = vmul.f32 %v1675, %v1680
  %1684 = vrot.lane.b32.xlu0 %v1682, 32
  %v1685 = vpop.permute.xlu0 %1684
  %v1687 = vadd.f32 %v1677, %v1685
  %v1688 = vtanh.pop %v1687
  %1690 = vrot.lane.b32.xlu0 %v1688, 64
  %v1691 = vpop.permute.xlu0 %1690
  %v1693 = vmul.f32 %v1675, %v1691
  %v1694 = vld [vmem:[%s713] sm:$0xff]
  %1696 = vrot.lane.b32.xlu0 %v1693, 32
  %v1697 = vpop.permute.xlu0 %1696
  %v1698 = vsel %vm47, %v1697, 0
  %1700 = vmatprep.subr.mxu0 0.0
  %1701 = vmatpush1.msra.mxu0 %v1190
  %1702 = vmatprep.subr.mxu0 0.0
  %1703 = vmatpush1.msra.mxu0 %v1191
  %1704 = vmatprep.subr.mxu0 0.0
  %1705 = vmatpush1.msra.mxu0 %v1192
  %1706 = vmatprep.subr.mxu0 0.0
  %1707 = vmatpush1.msra.mxu0 %v1193
  %1708 = vmatprep.subr.mxu0 0.0
  %1709 = vmatpush1.msra.mxu0 0.0
  %1710 = vmatprep.subr.mxu0 0.0
  %1711 = vmatpush1.msra.mxu0 0.0
  %1712 = vmatprep.subr.mxu0 0.0
  %1713 = vmatpush1.msra.mxu0 0.0
  %1714 = vmatprep.subr.mxu0 0.0
  %1715 = vmatpush1.msra.mxu0 0.0
  %1716 = vmatprep.subr.mxu0 0.0
  %1717 = vmatpush1.msra.mxu0 0.0
  %1718 = vmatprep.subr.mxu0 0.0
  %1719 = vmatpush1.msra.mxu0 0.0
  %1720 = vmatprep.subr.mxu0 0.0
  %1721 = vmatpush1.msra.mxu0 0.0
  %1722 = vmatprep.subr.mxu0 0.0
  %1723 = vmatpush1.msra.mxu0 0.0
  %1724 = vmatprep.subr.mxu0 0.0
  %1725 = vmatpush1.msra.mxu0 0.0
  %1726 = vmatprep.subr.mxu0 0.0
  %1727 = vmatpush1.msra.mxu0 0.0
  %1728 = vmatprep.subr.mxu0 0.0
  %1729 = vmatpush1.msra.mxu0 0.0
  %1730 = vmatprep.subr.mxu0 0.0
  %1731 = vmatpush1.msra.mxu0 0.0
  %1732 = vmatprep.subr.mxu0 0.0
  %1733 = vmatpush1.msra.mxu0 0.0
  %1734 = vmatprep.subr.mxu0 0.0
  %1735 = vmatpush1.msra.mxu0 0.0
  %1736 = vmatprep.subr.mxu0 0.0
  %1737 = vmatpush1.msra.mxu0 0.0
  %1738 = vmatprep.subr.mxu0 0.0
  %1739 = vmatpush1.msra.mxu0 0.0
  %1740 = vmatprep.subr.mxu0 0.0
  %1741 = vmatpush1.msra.mxu0 0.0
  %1742 = vmatprep.subr.mxu0 0.0
  %1743 = vmatpush1.msra.mxu0 0.0
  %1744 = vmatprep.subr.mxu0 0.0
  %1745 = vmatpush1.msra.mxu0 0.0
  %1746 = vmatprep.subr.mxu0 0.0
  %1747 = vmatpush1.msra.mxu0 0.0
  %1748 = vmatprep.subr.mxu0 0.0
  %1749 = vmatpush1.msra.mxu0 0.0
  %1750 = vmatprep.subr.mxu0 0.0
  %1751 = vmatpush1.msra.mxu0 0.0
  %1752 = vmatprep.subr.mxu0 0.0
  %1753 = vmatpush1.msra.mxu0 0.0
  %1754 = vmatprep.subr.mxu0 0.0
  %1755 = vmatpush1.msra.mxu0 0.0
  %1756 = vmatprep.subr.mxu0 0.0
  %1757 = vmatpush1.msra.mxu0 0.0
  %1758 = vmatprep.subr.mxu0 0.0
  %1759 = vmatpush1.msra.mxu0 0.0
  %1760 = vmatprep.subr.mxu0 0.0
  %1761 = vmatpush1.msra.mxu0 0.0
  %1762 = vmatprep.subr.mxu0 0.0
  %1763 = vmatpush1.msra.mxu0 0.0
  %1764 = vmatprep.mubr.f32.mxu0 0.0
  %1765 = vmatmul.mubr.f32.gmra.mrb[0].mxu0 %v1698
  %v1766 = vpop.f32.mrb[0].mxu0
  %v1767 = vadd.f32 0.0, %v1766
  %v1768 = vpop.f32.mrb[0].mxu0
  %1769 = vdwg.mxu0
  %v1770 = vadd.f32 %v1694, %v1767
  %v1771 = vxor.u32 %v1770, 2147483648
  %v1772 = vmul.f32 %v1771, 1.442695
  %v1773 = vpow.pop %v1772
  %v1774 = vadd.f32 %v1773, 1.0
  %v1775 = vrcp.pop %v1774
  %v1776 = vmul.f32 1.0, %v1775
  %v1777 = vtanh.pop %v1770
  %v1778 = vmul.f32 %v1776, %v1687
  %1780 = vrot.lane.b32.xlu0 %v1777, 64
  %v1781 = vpop.permute.xlu0 %1780
  %v1783 = vmul.f32 %v1776, %v1781
  %1785 = vrot.lane.b32.xlu0 %v1783, 32
  %v1786 = vpop.permute.xlu0 %1785
  %v1788 = vadd.f32 %v1778, %v1786
  %v1789 = vtanh.pop %v1788
  %1791 = vrot.lane.b32.xlu0 %v1789, 64
  %v1792 = vpop.permute.xlu0 %1791
  %v1794 = vmul.f32 %v1776, %v1792
  %v1795 = vld [vmem:[%s818] sm:$0xff]
  %1797 = vrot.lane.b32.xlu0 %v1794, 32
  %v1798 = vpop.permute.xlu0 %1797
  %v1799 = vsel %vm47, %v1798, 0
  %1801 = vmatprep.subr.mxu0 0.0
  %1802 = vmatpush1.msra.mxu0 %v1190
  %1803 = vmatprep.subr.mxu0 0.0
  %1804 = vmatpush1.msra.mxu0 %v1191
  %1805 = vmatprep.subr.mxu0 0.0
  %1806 = vmatpush1.msra.mxu0 %v1192
  %1807 = vmatprep.subr.mxu0 0.0
  %1808 = vmatpush1.msra.mxu0 %v1193
  %1809 = vmatprep.subr.mxu0 0.0
  %1810 = vmatpush1.msra.mxu0 0.0
  %1811 = vmatprep.subr.mxu0 0.0
  %1812 = vmatpush1.msra.mxu0 0.0
  %1813 = vmatprep.subr.mxu0 0.0
  %1814 = vmatpush1.msra.mxu0 0.0
  %1815 = vmatprep.subr.mxu0 0.0
  %1816 = vmatpush1.msra.mxu0 0.0
  %1817 = vmatprep.subr.mxu0 0.0
  %1818 = vmatpush1.msra.mxu0 0.0
  %1819 = vmatprep.subr.mxu0 0.0
  %1820 = vmatpush1.msra.mxu0 0.0
  %1821 = vmatprep.subr.mxu0 0.0
  %1822 = vmatpush1.msra.mxu0 0.0
  %1823 = vmatprep.subr.mxu0 0.0
  %1824 = vmatpush1.msra.mxu0 0.0
  %1825 = vmatprep.subr.mxu0 0.0
  %1826 = vmatpush1.msra.mxu0 0.0
  %1827 = vmatprep.subr.mxu0 0.0
  %1828 = vmatpush1.msra.mxu0 0.0
  %1829 = vmatprep.subr.mxu0 0.0
  %1830 = vmatpush1.msra.mxu0 0.0
  %1831 = vmatprep.subr.mxu0 0.0
  %1832 = vmatpush1.msra.mxu0 0.0
  %1833 = vmatprep.subr.mxu0 0.0
  %1834 = vmatpush1.msra.mxu0 0.0
  %1835 = vmatprep.subr.mxu0 0.0
  %1836 = vmatpush1.msra.mxu0 0.0
  %1837 = vmatprep.subr.mxu0 0.0
  %1838 = vmatpush1.msra.mxu0 0.0
  %1839 = vmatprep.subr.mxu0 0.0
  %1840 = vmatpush1.msra.mxu0 0.0
  %1841 = vmatprep.subr.mxu0 0.0
  %1842 = vmatpush1.msra.mxu0 0.0
  %1843 = vmatprep.subr.mxu0 0.0
  %1844 = vmatpush1.msra.mxu0 0.0
  %1845 = vmatprep.subr.mxu0 0.0
  %1846 = vmatpush1.msra.mxu0 0.0
  %1847 = vmatprep.subr.mxu0 0.0
  %1848 = vmatpush1.msra.mxu0 0.0
  %1849 = vmatprep.subr.mxu0 0.0
  %1850 = vmatpush1.msra.mxu0 0.0
  %1851 = vmatprep.subr.mxu0 0.0
  %1852 = vmatpush1.msra.mxu0 0.0
  %1853 = vmatprep.subr.mxu0 0.0
  %1854 = vmatpush1.msra.mxu0 0.0
  %1855 = vmatprep.subr.mxu0 0.0
  %1856 = vmatpush1.msra.mxu0 0.0
  %1857 = vmatprep.subr.mxu0 0.0
  %1858 = vmatpush1.msra.mxu0 0.0
  %1859 = vmatprep.subr.mxu0 0.0
  %1860 = vmatpush1.msra.mxu0 0.0
  %1861 = vmatprep.subr.mxu0 0.0
  %1862 = vmatpush1.msra.mxu0 0.0
  %1863 = vmatprep.subr.mxu0 0.0
  %1864 = vmatpush1.msra.mxu0 0.0
  %1865 = vmatprep.mubr.f32.mxu0 0.0
  %1866 = vmatmul.mubr.f32.gmra.mrb[0].mxu0 %v1799
  %v1867 = vpop.f32.mrb[0].mxu0
  %v1868 = vadd.f32 0.0, %v1867
  %v1869 = vpop.f32.mrb[0].mxu0
  %1870 = vdwg.mxu0
  %v1871 = vadd.f32 %v1795, %v1868
  %v1872 = vxor.u32 %v1871, 2147483648
  %v1873 = vmul.f32 %v1872, 1.442695
  %v1874 = vpow.pop %v1873
  %v1875 = vadd.f32 %v1874, 1.0
  %v1876 = vrcp.pop %v1875
  %v1877 = vmul.f32 1.0, %v1876
  %v1878 = vtanh.pop %v1871
  %v1879 = vmul.f32 %v1877, %v1788
  %1881 = vrot.lane.b32.xlu0 %v1878, 64
  %v1882 = vpop.permute.xlu0 %1881
  %v1884 = vmul.f32 %v1877, %v1882
  %1886 = vrot.lane.b32.xlu0 %v1884, 32
  %v1887 = vpop.permute.xlu0 %1886
  %v1889 = vadd.f32 %v1879, %v1887
  %v1890 = vtanh.pop %v1889
  %1892 = vrot.lane.b32.xlu0 %v1890, 64
  %v1893 = vpop.permute.xlu0 %1892
  %v1895 = vmul.f32 %v1877, %v1893
  %v1896 = vld [vmem:[%s923] sm:$0xff]
  %1898 = vrot.lane.b32.xlu0 %v1895, 32
  %v1899 = vpop.permute.xlu0 %1898
  %v1900 = vsel %vm47, %v1899, 0
  %1902 = vmatprep.subr.mxu0 0.0
  %1903 = vmatpush1.msra.mxu0 %v1190
  %1904 = vmatprep.subr.mxu0 0.0
  %1905 = vmatpush1.msra.mxu0 %v1191
  %1906 = vmatprep.subr.mxu0 0.0
  %1907 = vmatpush1.msra.mxu0 %v1192
  %1908 = vmatprep.subr.mxu0 0.0
  %1909 = vmatpush1.msra.mxu0 %v1193
  %1910 = vmatprep.subr.mxu0 0.0
  %1911 = vmatpush1.msra.mxu0 0.0
  %1912 = vmatprep.subr.mxu0 0.0
  %1913 = vmatpush1.msra.mxu0 0.0
  %1914 = vmatprep.subr.mxu0 0.0
  %1915 = vmatpush1.msra.mxu0 0.0
  %1916 = vmatprep.subr.mxu0 0.0
  %1917 = vmatpush1.msra.mxu0 0.0
  %1918 = vmatprep.subr.mxu0 0.0
  %1919 = vmatpush1.msra.mxu0 0.0
  %1920 = vmatprep.subr.mxu0 0.0
  %1921 = vmatpush1.msra.mxu0 0.0
  %1922 = vmatprep.subr.mxu0 0.0
  %1923 = vmatpush1.msra.mxu0 0.0
  %1924 = vmatprep.subr.mxu0 0.0
  %1925 = vmatpush1.msra.mxu0 0.0
  %1926 = vmatprep.subr.mxu0 0.0
  %1927 = vmatpush1.msra.mxu0 0.0
  %1928 = vmatprep.subr.mxu0 0.0
  %1929 = vmatpush1.msra.mxu0 0.0
  %1930 = vmatprep.subr.mxu0 0.0
  %1931 = vmatpush1.msra.mxu0 0.0
  %1932 = vmatprep.subr.mxu0 0.0
  %1933 = vmatpush1.msra.mxu0 0.0
  %1934 = vmatprep.subr.mxu0 0.0
  %1935 = vmatpush1.msra.mxu0 0.0
  %1936 = vmatprep.subr.mxu0 0.0
  %1937 = vmatpush1.msra.mxu0 0.0
  %1938 = vmatprep.subr.mxu0 0.0
  %1939 = vmatpush1.msra.mxu0 0.0
  %1940 = vmatprep.subr.mxu0 0.0
  %1941 = vmatpush1.msra.mxu0 0.0
  %1942 = vmatprep.subr.mxu0 0.0
  %1943 = vmatpush1.msra.mxu0 0.0
  %1944 = vmatprep.subr.mxu0 0.0
  %1945 = vmatpush1.msra.mxu0 0.0
  %1946 = vmatprep.subr.mxu0 0.0
  %1947 = vmatpush1.msra.mxu0 0.0
  %1948 = vmatprep.subr.mxu0 0.0
  %1949 = vmatpush1.msra.mxu0 0.0
  %1950 = vmatprep.subr.mxu0 0.0
  %1951 = vmatpush1.msra.mxu0 0.0
  %1952 = vmatprep.subr.mxu0 0.0
  %1953 = vmatpush1.msra.mxu0 0.0
  %1954 = vmatprep.subr.mxu0 0.0
  %1955 = vmatpush1.msra.mxu0 0.0
  %1956 = vmatprep.subr.mxu0 0.0
  %1957 = vmatpush1.msra.mxu0 0.0
  %1958 = vmatprep.subr.mxu0 0.0
  %1959 = vmatpush1.msra.mxu0 0.0
  %1960 = vmatprep.subr.mxu0 0.0
  %1961 = vmatpush1.msra.mxu0 0.0
  %1962 = vmatprep.subr.mxu0 0.0
  %1963 = vmatpush1.msra.mxu0 0.0
  %1964 = vmatprep.subr.mxu0 0.0
  %1965 = vmatpush1.msra.mxu0 0.0
  %1966 = vmatprep.mubr.f32.mxu0 0.0
  %1967 = vmatmul.mubr.f32.gmra.mrb[0].mxu0 %v1900
  %v1968 = vpop.f32.mrb[0].mxu0
  %v1969 = vadd.f32 0.0, %v1968
  %v1970 = vpop.f32.mrb[0].mxu0
  %1971 = vdwg.mxu0
  %v1972 = vadd.f32 %v1896, %v1969
  %v1973 = vxor.u32 %v1972, 2147483648
  %v1974 = vmul.f32 %v1973, 1.442695
  %v1975 = vpow.pop %v1974
  %v1976 = vadd.f32 %v1975, 1.0
  %v1977 = vrcp.pop %v1976
  %v1978 = vmul.f32 1.0, %v1977
  %v1979 = vtanh.pop %v1972
  %v1980 = vmul.f32 %v1978, %v1889
  %1982 = vrot.lane.b32.xlu0 %v1979, 64
  %v1983 = vpop.permute.xlu0 %1982
  %v1985 = vmul.f32 %v1978, %v1983
  %1987 = vrot.lane.b32.xlu0 %v1985, 32
  %v1988 = vpop.permute.xlu0 %1987
  %v1990 = vadd.f32 %v1980, %v1988
  %v1991 = vtanh.pop %v1990
  %1993 = vrot.lane.b32.xlu0 %v1991, 64
  %v1994 = vpop.permute.xlu0 %1993
  %v1996 = vmul.f32 %v1978, %v1994
  %1998 = vrot.lane.b32.xlu0 %v1996, 32
  %v1999 = vpop.permute.xlu0 %1998
  %s2001 = scalar_lea.vmem %s7, 8
  %2002 = vst.msk [vmem:[%s2001] sm:$0xff] %vm47, %v1999
  %2004 = vrot.lane.b32.xlu0 %v1990, 96
  %v2005 = vpop.permute.xlu0 %2004
  %s2007 = scalar_lea.vmem %s8, 8
  %2008 = vst.msk [vmem:[%s2007] sm:$0xff] %vm47, %v2005
  // Predicated region
  $region30: #{encoder_forward.1} parent=0 // pred_check
    _
  $region31: #{encoder_forward.1} parent=0 // pred_check_branch
    %2010 = sbr.rel (0) target = $region33
  $region32: #{encoder_forward.1} parent=0 // pred_region
    _
  $region33: #{encoder_forward.1} parent=0 // pred_fallthru
    _
  // Predicated region
  $region34: #{encoder_forward.1} parent=0 // pred_check
    _
  $region35: #{encoder_forward.1} parent=0 // pred_check_branch
    %2012 = sbr.rel (0) target = $region37
  $region36: #{encoder_forward.1} parent=0 // pred_region
    _
  $region37: #{encoder_forward.1} parent=0 // pred_fallthru
    _
  // Predicated region
  $region38: #{encoder_forward.1} parent=0 // pred_check
    _
  $region39: #{encoder_forward.1} parent=0 // pred_check_branch
    %2014 = sbr.rel (0) target = $region41
  $region40: #{encoder_forward.1} parent=0 // pred_region
    _
  $region41: #{encoder_forward.1} parent=0 // pred_fallthru
    _
  // Predicated region
  $region42: #{encoder_forward.1} parent=0 // pred_check
    _
  $region43: #{encoder_forward.1} parent=0 // pred_check_branch
    %2016 = sbr.rel (0) target = $region45
  $region44: #{encoder_forward.1} parent=0 // pred_region
    _
  $region45: #{encoder_forward.1} parent=0 // pred_fallthru
    _

</llo_original>
